<compile_context>
chip_gen: v7x
topology: tpu7x:2x2x1
jax: 0.10.0
libtpu: 0.0.40
codegen_flags: <defaults>
</compile_context>

<pallas_src>
import functools

import jax
import jax.numpy as jnp
from jax.experimental import pallas as pl
from jax.experimental.pallas import tpu as pltpu


_TAPS = tuple((kh, kw) for kh in range(3) for kw in range(3))


def _phase_split(out_parity, k):
    """Row 2*i + (out_parity + k - 1) of the upsampled map == phase `rho` at i + offset."""
    t = out_parity + k - 1
    return t % 2, t // 2          # (phase parity, spatial offset in {-1, 0, 1})


# ----------------------------------------------------------------------------
# Fused kernel: conv1 -> up (sub-pixel, fused phases) -> conv2 (fused phases)
# -> concat-with-skip (skip via DMA). One batch element per grid step, all
# intermediates channel-major (C, H*W) in vregs/VMEM.
# ----------------------------------------------------------------------------
def decoder_block_kernel(x_ref, y_hbm,
                         w1_ref, s1_ref, b1_ref,
                         wup_ref, sup_ref, bup_ref,
                         w2_ref, s2_ref, b2_ref,
                         out_ref, sem, *, h, w):
    hw = h * w
    mid = s1_ref.shape[0]
    cout = s2_ref.shape[0]
    cskip = y_hbm.shape[1]
    b = pl.program_id(0)

    # ---- skip path: DMA y (HBM) straight into the first cskip channel rows of the
    #      output block. Overlaps with all the compute below; never uses vld/vst slots.
    copies = []
    for q in range(4):
        cp = pltpu.make_async_copy(
            y_hbm.at[4 * b + q],                       # (cskip, hw) slab in HBM
            out_ref.at[0, q, pl.ds(0, cskip), :],      # rows [0, cskip) of the VMEM out block
            sem.at[q])
        cp.start()
        copies.append(cp)

    # ---- lane-index helpers for zero-border masks (channel-on-sublane, HW-on-lane) ----
    lane = jax.lax.broadcasted_iota(jnp.int32, (1, hw), 1)
    if (w & (w - 1)) == 0:                             # power-of-two width: shifts/ands only
        row_i = lane >> (w.bit_length() - 1)
        col_j = lane & (w - 1)
    else:
        row_i = lane // w
        col_j = lane % w

    cache = {}

    def shift2d(src, tag, di, dj):
        """src[ch, i*w + j] -> src[ch, (i+di)*w + (j+dj)], zero outside the image."""
        key = (tag, di, dj)
        if key not in cache:
            s = di * w + dj
            val = src if s == 0 else pltpu.roll(src, (-s) % hw, axis=1)  # XLU lane rotate
            conds = []
            if di > 0:
                conds.append(row_i < h - di)
            elif di < 0:
                conds.append(row_i >= -di)
            if dj > 0:
                conds.append(col_j < w - dj)
            elif dj < 0:
                conds.append(col_j >= -dj)
            if conds:
                m = conds[0]
                for cnd in conds[1:]:
                    m = jnp.logical_and(m, cnd)
                val = jnp.where(m, val, 0.0)
            cache[key] = val
        return cache[key]

    # ---- stage 1: 3x3 'same' conv + BN + ReLU (one im2col matmul) -----------------------
    x = x_ref[0]                                                        # (cin_p, hw) f32
    patch1 = jnp.concatenate(
        [shift2d(x, "x", kh - 1, kw - 1) for kh, kw in _TAPS], axis=0
    ).astype(jnp.bfloat16)                                              # (9*cin_p, hw)
    a1 = jnp.dot(w1_ref[...], patch1, preferred_element_type=jnp.float32)
    x1 = jnp.maximum(a1 * s1_ref[...] + b1_ref[...], 0.0)               # (mid, hw) f32

    # ---- stage 2: ConvTranspose2d(k=3, s=2, p=1, op=1) + BN + ReLU ----------------------
    # Sub-pixel decomposition, all 4 output phases fused into ONE matmul:
    # rows of wup = output phases, columns = the 4 input shifts (0,0),(0,1),(1,0),(1,1).
    up_patch = jnp.concatenate(
        [shift2d(x1, "x1", di, dj) for di, dj in ((0, 0), (0, 1), (1, 0), (1, 1))],
        axis=0).astype(jnp.bfloat16)                                    # (4*mid, hw)
    a_up = jnp.dot(wup_ref[...], up_patch, preferred_element_type=jnp.float32)
    u = jnp.maximum(a_up * sup_ref[...] + bup_ref[...], 0.0)            # (4*mid, hw) f32
    u_ph = [u[p * mid:(p + 1) * mid, :] for p in range(4)]              # aligned row slices

    # ---- stage 3: 3x3 'same' conv on the 2x map + BN + ReLU, all 4 phases in ONE matmul --
    phase_patches = []
    for r in range(2):
        for c in range(2):
            taps = []
            for kh in range(3):
                rho, di = _phase_split(r, kh)
                for kw in range(3):
                    sig, dj = _phase_split(c, kw)
                    p = 2 * rho + sig
                    taps.append(shift2d(u_ph[p], ("u", p), di, dj))
            phase_patches.append(
                jnp.concatenate(taps, axis=0).astype(jnp.bfloat16))     # (9*mid, hw)
    patch2 = jnp.concatenate(phase_patches, axis=1)                     # (9*mid, 4*hw)
    a2 = jnp.dot(w2_ref[...], patch2, preferred_element_type=jnp.float32)
    o = jnp.maximum(a2 * s2_ref[...] + b2_ref[...], 0.0)                # (cout, 4*hw) f32

    # lane-dense, unmasked stores of the conv channels (skip channels were DMA'd above)
    for q in range(4):
        out_ref[0, q, cskip:cskip + cout, :] = (
            o[:, q * hw:(q + 1) * hw].astype(out_ref.dtype))

    # make sure the skip DMAs landed before the output block is written back
    for cp in copies:
        cp.wait()


def _batch_dim_semantics():
    # v7x has two TensorCores per chip; CORE_PARALLEL actually splits the batch grid
    # across them (plain "parallel" does not change codegen).  No effect on v5e/v6e.
    kind = jax.devices()[0].device_kind.lower()
    if ("v7" in kind or "7x" in kind) and hasattr(pltpu, "CORE_PARALLEL"):
        return (pltpu.CORE_PARALLEL,)
    return ("parallel",)


def decoder_block_fused(x_cm, y_flat, params, h, w):
    """x_cm: (N, Cin_pad, H*W) channel-major; y_flat: (N*4, Cskip, H*W) phase-major skip.
    Returns (N, 4, Cskip+Cout, H*W), phase index q = 2*row_parity + col_parity."""
    n, cin_p, hw = x_cm.shape
    cskip = y_flat.shape[1]
    mid = params["s1"].shape[0]
    cout = params["s2"].shape[0]
    ctot = cskip + cout
    kernel = functools.partial(decoder_block_kernel, h=h, w=w)
    return pl.pallas_call(
        kernel,
        out_shape=jax.ShapeDtypeStruct((n, 4, ctot, hw), jnp.float32),
        grid=(n,),
        in_specs=[
            pl.BlockSpec((1, cin_p, hw), lambda b: (b, 0, 0)),
            pl.BlockSpec(memory_space=pl.ANY),              # skip y stays in HBM, DMA'd in-kernel
            pl.BlockSpec((mid, 9 * cin_p), lambda b: (0, 0)),
            pl.BlockSpec((mid, 1), lambda b: (0, 0)),
            pl.BlockSpec((mid, 1), lambda b: (0, 0)),
            pl.BlockSpec((4 * mid, 4 * mid), lambda b: (0, 0)),
            pl.BlockSpec((4 * mid, 1), lambda b: (0, 0)),
            pl.BlockSpec((4 * mid, 1), lambda b: (0, 0)),
            pl.BlockSpec((cout, 9 * mid), lambda b: (0, 0)),
            pl.BlockSpec((cout, 1), lambda b: (0, 0)),
            pl.BlockSpec((cout, 1), lambda b: (0, 0)),
        ],
        out_specs=pl.BlockSpec((1, 4, ctot, hw), lambda b: (b, 0, 0, 0)),
        scratch_shapes=[pltpu.SemaphoreType.DMA((4,))],     # one DMA sem per output phase
        compiler_params=pltpu.CompilerParams(
            dimension_semantics=_batch_dim_semantics(),
            vmem_limit_bytes=32 * 1024 * 1024),
    )(x_cm, y_flat,
      params["w1"], params["s1"], params["b1"],
      params["w_up"], params["s_up"], params["b_up"],
      params["w2"], params["s2"], params["b2"])


# ----------------------------------------------------------------------------
# Parameter construction (deterministic, synthetic), BN folded for inference.
# All matmul weights are pre-transposed for the channel-major orientation:
#   out(C_out, HW) = W^T(C_out, K) @ patch(K, HW).
# ----------------------------------------------------------------------------
def fold_bn(gamma, beta, mean, var, eps=1e-5):
    scale = gamma / jnp.sqrt(var + eps)
    bias = beta - mean * scale
    return scale[:, None].astype(jnp.float32), bias[:, None].astype(jnp.float32)


def make_params(key, in_channels, out_channels):
    mid = int(in_channels * 2)
    cin_p = in_channels + (-in_channels) % 8            # pad Cin to a sublane multiple
    k1, k2, k3 = jax.random.split(key, 3)

    # PyTorch layouts: Conv2d weight [out, in, kh, kw]; ConvTranspose2d weight [in, out, kh, kw].
    w1 = 0.1 * jax.random.normal(k1, (mid, in_channels, 3, 3), jnp.float32)
    wt = 0.1 * jax.random.normal(k2, (mid, mid, 3, 3), jnp.float32)
    w2 = 0.1 * jax.random.normal(k3, (out_channels, mid, 3, 3), jnp.float32)

    # im2col weights, tap-major (kh, kw) column blocks of shape (C_out, C_in_stage).
    w1p = jnp.pad(w1, ((0, 0), (0, cin_p - in_channels), (0, 0), (0, 0)))
    w1t = jnp.concatenate([w1p[:, :, kh, kw] for kh, kw in _TAPS], axis=1)   # (mid, 9*cin_p)
    w2t = jnp.concatenate([w2[:, :, kh, kw] for kh, kw in _TAPS], axis=1)    # (cout, 9*mid)

    # Sub-pixel phase weights for ConvTranspose2d(k=3, s=2, p=1, output_padding=1):
    #   out[2i  ,2j  ] = x[i,j]·wt[..,1,1]
    #   out[2i  ,2j+1] = x[i,j]·wt[..,1,2] + x[i,j+1]·wt[..,1,0]
    #   out[2i+1,2j  ] = x[i,j]·wt[..,2,1] + x[i+1,j]·wt[..,0,1]
    #   out[2i+1,2j+1] = x[i,j]·wt[..,2,2] + x[i,j+1]·wt[..,2,0]
    #                  + x[i+1,j]·wt[..,0,2] + x[i+1,j+1]·wt[..,0,0]
    # Fused: row blocks = the 4 output phases (2r+c), column blocks = the 4 input shifts
    # in the in-kernel order [(0,0),(0,1),(1,0),(1,1)].
    z = jnp.zeros((mid, mid), jnp.float32)
    m = lambda kh, kw: wt[:, :, kh, kw].T               # (out, in)
    wupt = jnp.concatenate([
        jnp.concatenate([m(1, 1), z,       z,       z      ], axis=1),
        jnp.concatenate([m(1, 2), m(1, 0), z,       z      ], axis=1),
        jnp.concatenate([m(2, 1), z,       m(0, 1), z      ], axis=1),
        jnp.concatenate([m(2, 2), m(2, 0), m(0, 2), m(0, 0)], axis=1),
    ], axis=0)                                          # (4*mid, 4*mid)

    def bn(c):
        gamma = 1.0 + 0.01 * jnp.arange(c, dtype=jnp.float32)
        beta = 0.01 * jnp.arange(c, dtype=jnp.float32)
        return fold_bn(gamma, beta, jnp.zeros((c,), jnp.float32),
                       jnp.ones((c,), jnp.float32))

    s1, b1 = bn(mid)
    s_up, b_up = bn(mid)
    s2, b2 = bn(out_channels)
    return dict(
        w1=w1t.astype(jnp.bfloat16), s1=s1, b1=b1,
        w_up=wupt.astype(jnp.bfloat16),
        s_up=jnp.tile(s_up, (4, 1)), b_up=jnp.tile(b_up, (4, 1)),
        w2=w2t.astype(jnp.bfloat16), s2=s2, b2=b2)


# ----------------------------------------------------------------------------
# DecoderBlock forward (NCHW in / NCHW out, matching the PyTorch module)
# ----------------------------------------------------------------------------
@jax.jit
def decoder_block_forward(params, x_nchw, y_nchw):
    n, cin, h, w = x_nchw.shape
    cskip = y_nchw.shape[1]
    hw = h * w
    cin_p = cin + (-cin) % 8

    # channel-major flat input (N, Cin_pad, H*W), channels padded to a sublane multiple
    x_cm = x_nchw.astype(jnp.float32).reshape(n, cin, hw)
    if cin_p != cin:
        x_cm = jnp.pad(x_cm, ((0, 0), (0, cin_p - cin), (0, 0)))

    # TODO(synk): ChunkConv definition was not provided; y passes through unchanged.
    # Phase-decompose the skip: y[b, ch, 2i+r, 2j+c] -> y_flat[4b + 2r + c, ch, i*W + j].
    y6 = y_nchw.astype(jnp.float32).reshape(n, cskip, h, 2, w, 2)
    y_flat = jnp.transpose(y6, (0, 3, 5, 1, 2, 4)).reshape(n * 4, cskip, hw)

    out_ph = decoder_block_fused(x_cm, y_flat, params, h, w)   # (n, 4, ctot, hw)

    # Fold phases back to NCHW with a single transpose.
    ctot = out_ph.shape[2]
    out6 = out_ph.reshape(n, 2, 2, ctot, h, w)
    out = jnp.transpose(out6, (0, 3, 4, 1, 5, 2)).reshape(n, ctot, 2 * h, 2 * w)

    # DropBlock2d: identity in eval/inference mode.
    # TODO(synk): training-mode DropBlock masking and BatchNorm batch statistics not implemented.
    return out


if __name__ == "__main__":
    in_channels, out_channels, p = 4, 8, 0.1
    N, H, W = 2, 16, 16

    key = jax.random.PRNGKey(0)
    kx, ky, kp = jax.random.split(key, 3)
    x = jax.random.normal(kx, (N, in_channels, H, W), jnp.float32)              # NCHW
    y = jax.random.normal(ky, (N, out_channels, 2 * H, 2 * W), jnp.float32)     # NCHW skip

    params = make_params(kp, in_channels, out_channels)

    out = decoder_block_forward(params, x, y)
    jax.block_until_ready(out)

    expected_shape = (N, out_channels + out_channels, 2 * H, 2 * W)
    assert out.shape == expected_shape, (out.shape, expected_shape)
    print("KERNEL_OK")
</pallas_src>

<mosaic_0001>
module attributes {stable_mosaic.version = 11 : i64} {
  func.func @decoder_block_kernel(%arg0: i32, %arg1: memref<1x8x256xf32, #tpu.memory_space<vmem>>, %arg2: memref<8x8x256xf32, #tpu.memory_space<any>>, %arg3: memref<8x72xbf16, #tpu.memory_space<vmem>>, %arg4: memref<8x1xf32, #tpu.memory_space<vmem>>, %arg5: memref<8x1xf32, #tpu.memory_space<vmem>>, %arg6: memref<32x32xbf16, #tpu.memory_space<vmem>>, %arg7: memref<32x1xf32, #tpu.memory_space<vmem>>, %arg8: memref<32x1xf32, #tpu.memory_space<vmem>>, %arg9: memref<8x72xbf16, #tpu.memory_space<vmem>>, %arg10: memref<8x1xf32, #tpu.memory_space<vmem>>, %arg11: memref<8x1xf32, #tpu.memory_space<vmem>>, %arg12: memref<1x4x16x256xf32, #tpu.memory_space<vmem>>, %arg13: memref<4x!tpu.dma_semaphore, #tpu.memory_space<semaphore_mem>>) attributes {dimension_semantics = [#tpu.dimension_semantics<parallel>], iteration_bounds = array<i64: 2>, scalar_prefetch = 0 : i64, scratch_operands = 1 : i64, tpu.core_type = #tpu.core_type<tc>, window_params = [{transform_indices = @transform_0, window_bounds = array<i64: 1, 8, 256>}, {}, {pipeline_mode = #tpu.pipeline_mode<synchronous>, transform_indices = @transform_2, window_bounds = array<i64: 8, 72>}, {pipeline_mode = #tpu.pipeline_mode<synchronous>, transform_indices = @transform_3, window_bounds = array<i64: 8, 1>}, {pipeline_mode = #tpu.pipeline_mode<synchronous>, transform_indices = @transform_4, window_bounds = array<i64: 8, 1>}, {pipeline_mode = #tpu.pipeline_mode<synchronous>, transform_indices = @transform_5, window_bounds = array<i64: 32, 32>}, {pipeline_mode = #tpu.pipeline_mode<synchronous>, transform_indices = @transform_6, window_bounds = array<i64: 32, 1>}, {pipeline_mode = #tpu.pipeline_mode<synchronous>, transform_indices = @transform_7, window_bounds = array<i64: 32, 1>}, {pipeline_mode = #tpu.pipeline_mode<synchronous>, transform_indices = @transform_8, window_bounds = array<i64: 8, 72>}, {pipeline_mode = #tpu.pipeline_mode<synchronous>, transform_indices = @transform_9, window_bounds = array<i64: 8, 1>}, {pipeline_mode = #tpu.pipeline_mode<synchronous>, transform_indices = @transform_10, window_bounds = array<i64: 8, 1>}, {transform_indices = @transform_11, window_bounds = array<i64: 1, 4, 16, 256>}]} {
    %c4_i32 = arith.constant 4 : i32
    %0 = arith.muli %c4_i32, %arg0 : i32
    %c0_i32 = arith.constant 0 : i32
    %1 = arith.addi %0, %c0_i32 : i32
    %c0_i32_0 = arith.constant 0 : i32
    %c0_i32_1 = arith.constant 0 : i32
    %c0_i32_2 = arith.constant 0 : i32
    %c0_i32_3 = arith.constant 0 : i32
    %c0_i32_4 = arith.constant 0 : i32
    %2 = tpu.memref_slice %arg2[%1, %c0_i32_3, %c0_i32_4] : memref<8x8x256xf32, #tpu.memory_space<any>> -> memref<1x8x256xf32, #tpu.memory_space<any>>
    %3 = tpu.memref_squeeze %2 : memref<1x8x256xf32, #tpu.memory_space<any>> -> memref<8x256xf32, #tpu.memory_space<any>>
    %c0_i32_5 = arith.constant 0 : i32
    %c0_i32_6 = arith.constant 0 : i32
    %4 = tpu.memref_slice %arg12[%c0_i32_0, %c0_i32_1, %c0_i32_5, %c0_i32_6] : memref<1x4x16x256xf32, #tpu.memory_space<vmem>> -> memref<1x1x8x256xf32, #tpu.memory_space<vmem>>
    %5 = tpu.memref_squeeze %4 : memref<1x1x8x256xf32, #tpu.memory_space<vmem>> -> memref<8x256xf32, #tpu.memory_space<vmem>>
    %6 = tpu.memref_slice %arg13[%c0_i32_2] : memref<4x!tpu.dma_semaphore, #tpu.memory_space<semaphore_mem>> -> memref<1x!tpu.dma_semaphore, #tpu.memory_space<semaphore_mem>>
    %7 = tpu.memref_squeeze %6 : memref<1x!tpu.dma_semaphore, #tpu.memory_space<semaphore_mem>> -> memref<!tpu.dma_semaphore, #tpu.memory_space<semaphore_mem>>
    tpu.enqueue_dma source(%3 : memref<8x256xf32, #tpu.memory_space<any>>) target(%5 : memref<8x256xf32, #tpu.memory_space<vmem>>) target_semaphore(%7 : memref<!tpu.dma_semaphore, #tpu.memory_space<semaphore_mem>>)
    %c4_i32_7 = arith.constant 4 : i32
    %8 = arith.muli %c4_i32_7, %arg0 : i32
    %c1_i32 = arith.constant 1 : i32
    %9 = arith.addi %8, %c1_i32 : i32
    %c0_i32_8 = arith.constant 0 : i32
    %c1_i32_9 = arith.constant 1 : i32
    %c1_i32_10 = arith.constant 1 : i32
    %c0_i32_11 = arith.constant 0 : i32
    %c0_i32_12 = arith.constant 0 : i32
    %10 = tpu.memref_slice %arg2[%9, %c0_i32_11, %c0_i32_12] : memref<8x8x256xf32, #tpu.memory_space<any>> -> memref<1x8x256xf32, #tpu.memory_space<any>>
    %11 = tpu.memref_squeeze %10 : memref<1x8x256xf32, #tpu.memory_space<any>> -> memref<8x256xf32, #tpu.memory_space<any>>
    %c0_i32_13 = arith.constant 0 : i32
    %c0_i32_14 = arith.constant 0 : i32
    %12 = tpu.memref_slice %arg12[%c0_i32_8, %c1_i32_9, %c0_i32_13, %c0_i32_14] : memref<1x4x16x256xf32, #tpu.memory_space<vmem>> -> memref<1x1x8x256xf32, #tpu.memory_space<vmem>>
    %13 = tpu.memref_squeeze %12 : memref<1x1x8x256xf32, #tpu.memory_space<vmem>> -> memref<8x256xf32, #tpu.memory_space<vmem>>
    %14 = tpu.memref_slice %arg13[%c1_i32_10] : memref<4x!tpu.dma_semaphore, #tpu.memory_space<semaphore_mem>> -> memref<1x!tpu.dma_semaphore, #tpu.memory_space<semaphore_mem>>
    %15 = tpu.memref_squeeze %14 : memref<1x!tpu.dma_semaphore, #tpu.memory_space<semaphore_mem>> -> memref<!tpu.dma_semaphore, #tpu.memory_space<semaphore_mem>>
    tpu.enqueue_dma source(%11 : memref<8x256xf32, #tpu.memory_space<any>>) target(%13 : memref<8x256xf32, #tpu.memory_space<vmem>>) target_semaphore(%15 : memref<!tpu.dma_semaphore, #tpu.memory_space<semaphore_mem>>)
    %c4_i32_15 = arith.constant 4 : i32
    %16 = arith.muli %c4_i32_15, %arg0 : i32
    %c2_i32 = arith.constant 2 : i32
    %17 = arith.addi %16, %c2_i32 : i32
    %c0_i32_16 = arith.constant 0 : i32
    %c2_i32_17 = arith.constant 2 : i32
    %c2_i32_18 = arith.constant 2 : i32
    %c0_i32_19 = arith.constant 0 : i32
    %c0_i32_20 = arith.constant 0 : i32
    %18 = tpu.memref_slice %arg2[%17, %c0_i32_19, %c0_i32_20] : memref<8x8x256xf32, #tpu.memory_space<any>> -> memref<1x8x256xf32, #tpu.memory_space<any>>
    %19 = tpu.memref_squeeze %18 : memref<1x8x256xf32, #tpu.memory_space<any>> -> memref<8x256xf32, #tpu.memory_space<any>>
    %c0_i32_21 = arith.constant 0 : i32
    %c0_i32_22 = arith.constant 0 : i32
    %20 = tpu.memref_slice %arg12[%c0_i32_16, %c2_i32_17, %c0_i32_21, %c0_i32_22] : memref<1x4x16x256xf32, #tpu.memory_space<vmem>> -> memref<1x1x8x256xf32, #tpu.memory_space<vmem>>
    %21 = tpu.memref_squeeze %20 : memref<1x1x8x256xf32, #tpu.memory_space<vmem>> -> memref<8x256xf32, #tpu.memory_space<vmem>>
    %22 = tpu.memref_slice %arg13[%c2_i32_18] : memref<4x!tpu.dma_semaphore, #tpu.memory_space<semaphore_mem>> -> memref<1x!tpu.dma_semaphore, #tpu.memory_space<semaphore_mem>>
    %23 = tpu.memref_squeeze %22 : memref<1x!tpu.dma_semaphore, #tpu.memory_space<semaphore_mem>> -> memref<!tpu.dma_semaphore, #tpu.memory_space<semaphore_mem>>
    tpu.enqueue_dma source(%19 : memref<8x256xf32, #tpu.memory_space<any>>) target(%21 : memref<8x256xf32, #tpu.memory_space<vmem>>) target_semaphore(%23 : memref<!tpu.dma_semaphore, #tpu.memory_space<semaphore_mem>>)
    %c4_i32_23 = arith.constant 4 : i32
    %24 = arith.muli %c4_i32_23, %arg0 : i32
    %c3_i32 = arith.constant 3 : i32
    %25 = arith.addi %24, %c3_i32 : i32
    %c0_i32_24 = arith.constant 0 : i32
    %c3_i32_25 = arith.constant 3 : i32
    %c3_i32_26 = arith.constant 3 : i32
    %c0_i32_27 = arith.constant 0 : i32
    %c0_i32_28 = arith.constant 0 : i32
    %26 = tpu.memref_slice %arg2[%25, %c0_i32_27, %c0_i32_28] : memref<8x8x256xf32, #tpu.memory_space<any>> -> memref<1x8x256xf32, #tpu.memory_space<any>>
    %27 = tpu.memref_squeeze %26 : memref<1x8x256xf32, #tpu.memory_space<any>> -> memref<8x256xf32, #tpu.memory_space<any>>
    %c0_i32_29 = arith.constant 0 : i32
    %c0_i32_30 = arith.constant 0 : i32
    %28 = tpu.memref_slice %arg12[%c0_i32_24, %c3_i32_25, %c0_i32_29, %c0_i32_30] : memref<1x4x16x256xf32, #tpu.memory_space<vmem>> -> memref<1x1x8x256xf32, #tpu.memory_space<vmem>>
    %29 = tpu.memref_squeeze %28 : memref<1x1x8x256xf32, #tpu.memory_space<vmem>> -> memref<8x256xf32, #tpu.memory_space<vmem>>
    %30 = tpu.memref_slice %arg13[%c3_i32_26] : memref<4x!tpu.dma_semaphore, #tpu.memory_space<semaphore_mem>> -> memref<1x!tpu.dma_semaphore, #tpu.memory_space<semaphore_mem>>
    %31 = tpu.memref_squeeze %30 : memref<1x!tpu.dma_semaphore, #tpu.memory_space<semaphore_mem>> -> memref<!tpu.dma_semaphore, #tpu.memory_space<semaphore_mem>>
    tpu.enqueue_dma source(%27 : memref<8x256xf32, #tpu.memory_space<any>>) target(%29 : memref<8x256xf32, #tpu.memory_space<vmem>>) target_semaphore(%31 : memref<!tpu.dma_semaphore, #tpu.memory_space<semaphore_mem>>)
    %32 = tpu.iota {dimensions = array<i32: 1>} : vector<1x256xi32>
    %c4_i32_31 = arith.constant 4 : i32
    %33 = vector.broadcast %c4_i32_31 : i32 to vector<1x256xi32>
    %34 = arith.shrsi %32, %33 : vector<1x256xi32>
    %c15_i32 = arith.constant 15 : i32
    %35 = vector.broadcast %c15_i32 : i32 to vector<1x256xi32>
    %36 = arith.andi %32, %35 : vector<1x256xi32>
    %c0 = arith.constant 0 : index
    %c0_32 = arith.constant 0 : index
    %c0_33 = arith.constant 0 : index
    %37 = vector.load %arg1[%c0, %c0_32, %c0_33] : memref<1x8x256xf32, #tpu.memory_space<vmem>>, vector<1x8x256xf32>
    %38 = vector.shape_cast %37 : vector<1x8x256xf32> to vector<8x256xf32>
    %c17_i32 = arith.constant 17 : i32
    %39 = tpu.dynamic_rotate %38 by %c17_i32 dim 1 : vector<8x256xf32>, i32 -> vector<8x256xf32>
    %c1_i32_34 = arith.constant 1 : i32
    %40 = vector.broadcast %c1_i32_34 : i32 to vector<1x256xi32>
    %41 = arith.cmpi sge, %34, %40 : vector<1x256xi32>
    %c1_i32_35 = arith.constant 1 : i32
    %42 = vector.broadcast %c1_i32_35 : i32 to vector<1x256xi32>
    %43 = arith.cmpi sge, %36, %42 : vector<1x256xi32>
    %44 = arith.andi %41, %43 : vector<1x256xi1>
    %cst = arith.constant 0.000000e+00 : f32
    %45 = vector.shape_cast %44 : vector<1x256xi1> to vector<1x256xi1>
    %46 = vector.broadcast %45 : vector<1x256xi1> to vector<8x256xi1>
    %47 = vector.broadcast %cst : f32 to vector<8x256xf32>
    %48 = arith.select %46, %39, %47 : vector<8x256xi1>, vector<8x256xf32>
    %c16_i32 = arith.constant 16 : i32
    %49 = tpu.dynamic_rotate %38 by %c16_i32 dim 1 : vector<8x256xf32>, i32 -> vector<8x256xf32>
    %c1_i32_36 = arith.constant 1 : i32
    %50 = vector.broadcast %c1_i32_36 : i32 to vector<1x256xi32>
    %51 = arith.cmpi sge, %34, %50 : vector<1x256xi32>
    %cst_37 = arith.constant 0.000000e+00 : f32
    %52 = vector.shape_cast %51 : vector<1x256xi1> to vector<1x256xi1>
    %53 = vector.broadcast %52 : vector<1x256xi1> to vector<8x256xi1>
    %54 = vector.broadcast %cst_37 : f32 to vector<8x256xf32>
    %55 = arith.select %53, %49, %54 : vector<8x256xi1>, vector<8x256xf32>
    %c15_i32_38 = arith.constant 15 : i32
    %56 = tpu.dynamic_rotate %38 by %c15_i32_38 dim 1 : vector<8x256xf32>, i32 -> vector<8x256xf32>
    %c1_i32_39 = arith.constant 1 : i32
    %57 = vector.broadcast %c1_i32_39 : i32 to vector<1x256xi32>
    %58 = arith.cmpi sge, %34, %57 : vector<1x256xi32>
    %c15_i32_40 = arith.constant 15 : i32
    %59 = vector.broadcast %c15_i32_40 : i32 to vector<1x256xi32>
    %60 = arith.cmpi slt, %36, %59 : vector<1x256xi32>
    %61 = arith.andi %58, %60 : vector<1x256xi1>
    %cst_41 = arith.constant 0.000000e+00 : f32
    %62 = vector.shape_cast %61 : vector<1x256xi1> to vector<1x256xi1>
    %63 = vector.broadcast %62 : vector<1x256xi1> to vector<8x256xi1>
    %64 = vector.broadcast %cst_41 : f32 to vector<8x256xf32>
    %65 = arith.select %63, %56, %64 : vector<8x256xi1>, vector<8x256xf32>
    %c1_i32_42 = arith.constant 1 : i32
    %66 = tpu.dynamic_rotate %38 by %c1_i32_42 dim 1 : vector<8x256xf32>, i32 -> vector<8x256xf32>
    %c1_i32_43 = arith.constant 1 : i32
    %67 = vector.broadcast %c1_i32_43 : i32 to vector<1x256xi32>
    %68 = arith.cmpi sge, %36, %67 : vector<1x256xi32>
    %cst_44 = arith.constant 0.000000e+00 : f32
    %69 = vector.shape_cast %68 : vector<1x256xi1> to vector<1x256xi1>
    %70 = vector.broadcast %69 : vector<1x256xi1> to vector<8x256xi1>
    %71 = vector.broadcast %cst_44 : f32 to vector<8x256xf32>
    %72 = arith.select %70, %66, %71 : vector<8x256xi1>, vector<8x256xf32>
    %c255_i32 = arith.constant 255 : i32
    %73 = tpu.dynamic_rotate %38 by %c255_i32 dim 1 : vector<8x256xf32>, i32 -> vector<8x256xf32>
    %c15_i32_45 = arith.constant 15 : i32
    %74 = vector.broadcast %c15_i32_45 : i32 to vector<1x256xi32>
    %75 = arith.cmpi slt, %36, %74 : vector<1x256xi32>
    %cst_46 = arith.constant 0.000000e+00 : f32
    %76 = vector.shape_cast %75 : vector<1x256xi1> to vector<1x256xi1>
    %77 = vector.broadcast %76 : vector<1x256xi1> to vector<8x256xi1>
    %78 = vector.broadcast %cst_46 : f32 to vector<8x256xf32>
    %79 = arith.select %77, %73, %78 : vector<8x256xi1>, vector<8x256xf32>
    %c241_i32 = arith.constant 241 : i32
    %80 = tpu.dynamic_rotate %38 by %c241_i32 dim 1 : vector<8x256xf32>, i32 -> vector<8x256xf32>
    %c15_i32_47 = arith.constant 15 : i32
    %81 = vector.broadcast %c15_i32_47 : i32 to vector<1x256xi32>
    %82 = arith.cmpi slt, %34, %81 : vector<1x256xi32>
    %c1_i32_48 = arith.constant 1 : i32
    %83 = vector.broadcast %c1_i32_48 : i32 to vector<1x256xi32>
    %84 = arith.cmpi sge, %36, %83 : vector<1x256xi32>
    %85 = arith.andi %82, %84 : vector<1x256xi1>
    %cst_49 = arith.constant 0.000000e+00 : f32
    %86 = vector.shape_cast %85 : vector<1x256xi1> to vector<1x256xi1>
    %87 = vector.broadcast %86 : vector<1x256xi1> to vector<8x256xi1>
    %88 = vector.broadcast %cst_49 : f32 to vector<8x256xf32>
    %89 = arith.select %87, %80, %88 : vector<8x256xi1>, vector<8x256xf32>
    %c240_i32 = arith.constant 240 : i32
    %90 = tpu.dynamic_rotate %38 by %c240_i32 dim 1 : vector<8x256xf32>, i32 -> vector<8x256xf32>
    %c15_i32_50 = arith.constant 15 : i32
    %91 = vector.broadcast %c15_i32_50 : i32 to vector<1x256xi32>
    %92 = arith.cmpi slt, %34, %91 : vector<1x256xi32>
    %cst_51 = arith.constant 0.000000e+00 : f32
    %93 = vector.shape_cast %92 : vector<1x256xi1> to vector<1x256xi1>
    %94 = vector.broadcast %93 : vector<1x256xi1> to vector<8x256xi1>
    %95 = vector.broadcast %cst_51 : f32 to vector<8x256xf32>
    %96 = arith.select %94, %90, %95 : vector<8x256xi1>, vector<8x256xf32>
    %c239_i32 = arith.constant 239 : i32
    %97 = tpu.dynamic_rotate %38 by %c239_i32 dim 1 : vector<8x256xf32>, i32 -> vector<8x256xf32>
    %c15_i32_52 = arith.constant 15 : i32
    %98 = vector.broadcast %c15_i32_52 : i32 to vector<1x256xi32>
    %99 = arith.cmpi slt, %34, %98 : vector<1x256xi32>
    %c15_i32_53 = arith.constant 15 : i32
    %100 = vector.broadcast %c15_i32_53 : i32 to vector<1x256xi32>
    %101 = arith.cmpi slt, %36, %100 : vector<1x256xi32>
    %102 = arith.andi %99, %101 : vector<1x256xi1>
    %cst_54 = arith.constant 0.000000e+00 : f32
    %103 = vector.shape_cast %102 : vector<1x256xi1> to vector<1x256xi1>
    %104 = vector.broadcast %103 : vector<1x256xi1> to vector<8x256xi1>
    %105 = vector.broadcast %cst_54 : f32 to vector<8x256xf32>
    %106 = arith.select %104, %97, %105 : vector<8x256xi1>, vector<8x256xf32>
    %107 = tpu.concatenate %48, %55, %65, %72, %38, %79, %89, %96, %106 in 0 : vector<8x256xf32>, vector<8x256xf32>, vector<8x256xf32>, vector<8x256xf32>, vector<8x256xf32>, vector<8x256xf32>, vector<8x256xf32>, vector<8x256xf32>, vector<8x256xf32> -> vector<72x256xf32>
    %108 = arith.truncf %107 : vector<72x256xf32> to vector<72x256xbf16>
    %c0_55 = arith.constant 0 : index
    %c0_56 = arith.constant 0 : index
    %109 = vector.load %arg3[%c0_55, %c0_56] : memref<8x72xbf16, #tpu.memory_space<vmem>>, vector<8x72xbf16>
    %cst_57 = arith.constant dense<0.000000e+00> : vector<8x256xf32>
    %110 = tpu.matmul %109, %108, %cst_57 {dimension_numbers = #tpu.dot_dimension_numbers<[1], [0], [0], [1], [0, 0, 1, 1], [], []>} : vector<8x72xbf16>, vector<72x256xbf16>, vector<8x256xf32> -> vector<8x256xf32>
    %c0_58 = arith.constant 0 : index
    %c0_59 = arith.constant 0 : index
    %111 = vector.load %arg4[%c0_58, %c0_59] : memref<8x1xf32, #tpu.memory_space<vmem>>, vector<8x1xf32>
    %112 = vector.broadcast %111 : vector<8x1xf32> to vector<8x256xf32>
    %113 = arith.mulf %110, %112 : vector<8x256xf32>
    %c0_60 = arith.constant 0 : index
    %c0_61 = arith.constant 0 : index
    %114 = vector.load %arg5[%c0_60, %c0_61] : memref<8x1xf32, #tpu.memory_space<vmem>>, vector<8x1xf32>
    %115 = vector.broadcast %114 : vector<8x1xf32> to vector<8x256xf32>
    %116 = arith.addf %113, %115 : vector<8x256xf32>
    %cst_62 = arith.constant 0.000000e+00 : f32
    %117 = vector.broadcast %cst_62 : f32 to vector<8x256xf32>
    %118 = arith.maximumf %116, %117 : vector<8x256xf32>
    %c255_i32_63 = arith.constant 255 : i32
    %119 = tpu.dynamic_rotate %118 by %c255_i32_63 dim 1 : vector<8x256xf32>, i32 -> vector<8x256xf32>
    %c15_i32_64 = arith.constant 15 : i32
    %120 = vector.broadcast %c15_i32_64 : i32 to vector<1x256xi32>
    %121 = arith.cmpi slt, %36, %120 : vector<1x256xi32>
    %cst_65 = arith.constant 0.000000e+00 : f32
    %122 = vector.shape_cast %121 : vector<1x256xi1> to vector<1x256xi1>
    %123 = vector.broadcast %122 : vector<1x256xi1> to vector<8x256xi1>
    %124 = vector.broadcast %cst_65 : f32 to vector<8x256xf32>
    %125 = arith.select %123, %119, %124 : vector<8x256xi1>, vector<8x256xf32>
    %c240_i32_66 = arith.constant 240 : i32
    %126 = tpu.dynamic_rotate %118 by %c240_i32_66 dim 1 : vector<8x256xf32>, i32 -> vector<8x256xf32>
    %c15_i32_67 = arith.constant 15 : i32
    %127 = vector.broadcast %c15_i32_67 : i32 to vector<1x256xi32>
    %128 = arith.cmpi slt, %34, %127 : vector<1x256xi32>
    %cst_68 = arith.constant 0.000000e+00 : f32
    %129 = vector.shape_cast %128 : vector<1x256xi1> to vector<1x256xi1>
    %130 = vector.broadcast %129 : vector<1x256xi1> to vector<8x256xi1>
    %131 = vector.broadcast %cst_68 : f32 to vector<8x256xf32>
    %132 = arith.select %130, %126, %131 : vector<8x256xi1>, vector<8x256xf32>
    %c239_i32_69 = arith.constant 239 : i32
    %133 = tpu.dynamic_rotate %118 by %c239_i32_69 dim 1 : vector<8x256xf32>, i32 -> vector<8x256xf32>
    %c15_i32_70 = arith.constant 15 : i32
    %134 = vector.broadcast %c15_i32_70 : i32 to vector<1x256xi32>
    %135 = arith.cmpi slt, %34, %134 : vector<1x256xi32>
    %c15_i32_71 = arith.constant 15 : i32
    %136 = vector.broadcast %c15_i32_71 : i32 to vector<1x256xi32>
    %137 = arith.cmpi slt, %36, %136 : vector<1x256xi32>
    %138 = arith.andi %135, %137 : vector<1x256xi1>
    %cst_72 = arith.constant 0.000000e+00 : f32
    %139 = vector.shape_cast %138 : vector<1x256xi1> to vector<1x256xi1>
    %140 = vector.broadcast %139 : vector<1x256xi1> to vector<8x256xi1>
    %141 = vector.broadcast %cst_72 : f32 to vector<8x256xf32>
    %142 = arith.select %140, %133, %141 : vector<8x256xi1>, vector<8x256xf32>
    %143 = tpu.concatenate %118, %125, %132, %142 in 0 : vector<8x256xf32>, vector<8x256xf32>, vector<8x256xf32>, vector<8x256xf32> -> vector<32x256xf32>
    %144 = arith.truncf %143 : vector<32x256xf32> to vector<32x256xbf16>
    %c0_73 = arith.constant 0 : index
    %c0_74 = arith.constant 0 : index
    %145 = vector.load %arg6[%c0_73, %c0_74] : memref<32x32xbf16, #tpu.memory_space<vmem>>, vector<32x32xbf16>
    %cst_75 = arith.constant dense<0.000000e+00> : vector<32x256xf32>
    %146 = tpu.matmul %145, %144, %cst_75 {dimension_numbers = #tpu.dot_dimension_numbers<[1], [0], [0], [1], [0, 0, 1, 1], [], []>} : vector<32x32xbf16>, vector<32x256xbf16>, vector<32x256xf32> -> vector<32x256xf32>
    %c0_76 = arith.constant 0 : index
    %c0_77 = arith.constant 0 : index
    %147 = vector.load %arg7[%c0_76, %c0_77] : memref<32x1xf32, #tpu.memory_space<vmem>>, vector<32x1xf32>
    %148 = vector.broadcast %147 : vector<32x1xf32> to vector<32x256xf32>
    %149 = arith.mulf %146, %148 : vector<32x256xf32>
    %c0_78 = arith.constant 0 : index
    %c0_79 = arith.constant 0 : index
    %150 = vector.load %arg8[%c0_78, %c0_79] : memref<32x1xf32, #tpu.memory_space<vmem>>, vector<32x1xf32>
    %151 = vector.broadcast %150 : vector<32x1xf32> to vector<32x256xf32>
    %152 = arith.addf %149, %151 : vector<32x256xf32>
    %cst_80 = arith.constant 0.000000e+00 : f32
    %153 = vector.broadcast %cst_80 : f32 to vector<32x256xf32>
    %154 = arith.maximumf %152, %153 : vector<32x256xf32>
    %155 = vector.extract_strided_slice %154 {offsets = [0, 0], sizes = [8, 256], strides = [1, 1]} : vector<32x256xf32> to vector<8x256xf32>
    %156 = vector.extract_strided_slice %154 {offsets = [8, 0], sizes = [8, 256], strides = [1, 1]} : vector<32x256xf32> to vector<8x256xf32>
    %157 = vector.extract_strided_slice %154 {offsets = [16, 0], sizes = [8, 256], strides = [1, 1]} : vector<32x256xf32> to vector<8x256xf32>
    %158 = vector.extract_strided_slice %154 {offsets = [24, 0], sizes = [8, 256], strides = [1, 1]} : vector<32x256xf32> to vector<8x256xf32>
    %c17_i32_81 = arith.constant 17 : i32
    %159 = tpu.dynamic_rotate %158 by %c17_i32_81 dim 1 : vector<8x256xf32>, i32 -> vector<8x256xf32>
    %c1_i32_82 = arith.constant 1 : i32
    %160 = vector.broadcast %c1_i32_82 : i32 to vector<1x256xi32>
    %161 = arith.cmpi sge, %34, %160 : vector<1x256xi32>
    %c1_i32_83 = arith.constant 1 : i32
    %162 = vector.broadcast %c1_i32_83 : i32 to vector<1x256xi32>
    %163 = arith.cmpi sge, %36, %162 : vector<1x256xi32>
    %164 = arith.andi %161, %163 : vector<1x256xi1>
    %cst_84 = arith.constant 0.000000e+00 : f32
    %165 = vector.shape_cast %164 : vector<1x256xi1> to vector<1x256xi1>
    %166 = vector.broadcast %165 : vector<1x256xi1> to vector<8x256xi1>
    %167 = vector.broadcast %cst_84 : f32 to vector<8x256xf32>
    %168 = arith.select %166, %159, %167 : vector<8x256xi1>, vector<8x256xf32>
    %c16_i32_85 = arith.constant 16 : i32
    %169 = tpu.dynamic_rotate %157 by %c16_i32_85 dim 1 : vector<8x256xf32>, i32 -> vector<8x256xf32>
    %c1_i32_86 = arith.constant 1 : i32
    %170 = vector.broadcast %c1_i32_86 : i32 to vector<1x256xi32>
    %171 = arith.cmpi sge, %34, %170 : vector<1x256xi32>
    %cst_87 = arith.constant 0.000000e+00 : f32
    %172 = vector.shape_cast %171 : vector<1x256xi1> to vector<1x256xi1>
    %173 = vector.broadcast %172 : vector<1x256xi1> to vector<8x256xi1>
    %174 = vector.broadcast %cst_87 : f32 to vector<8x256xf32>
    %175 = arith.select %173, %169, %174 : vector<8x256xi1>, vector<8x256xf32>
    %c16_i32_88 = arith.constant 16 : i32
    %176 = tpu.dynamic_rotate %158 by %c16_i32_88 dim 1 : vector<8x256xf32>, i32 -> vector<8x256xf32>
    %c1_i32_89 = arith.constant 1 : i32
    %177 = vector.broadcast %c1_i32_89 : i32 to vector<1x256xi32>
    %178 = arith.cmpi sge, %34, %177 : vector<1x256xi32>
    %cst_90 = arith.constant 0.000000e+00 : f32
    %179 = vector.shape_cast %178 : vector<1x256xi1> to vector<1x256xi1>
    %180 = vector.broadcast %179 : vector<1x256xi1> to vector<8x256xi1>
    %181 = vector.broadcast %cst_90 : f32 to vector<8x256xf32>
    %182 = arith.select %180, %176, %181 : vector<8x256xi1>, vector<8x256xf32>
    %c1_i32_91 = arith.constant 1 : i32
    %183 = tpu.dynamic_rotate %156 by %c1_i32_91 dim 1 : vector<8x256xf32>, i32 -> vector<8x256xf32>
    %c1_i32_92 = arith.constant 1 : i32
    %184 = vector.broadcast %c1_i32_92 : i32 to vector<1x256xi32>
    %185 = arith.cmpi sge, %36, %184 : vector<1x256xi32>
    %cst_93 = arith.constant 0.000000e+00 : f32
    %186 = vector.shape_cast %185 : vector<1x256xi1> to vector<1x256xi1>
    %187 = vector.broadcast %186 : vector<1x256xi1> to vector<8x256xi1>
    %188 = vector.broadcast %cst_93 : f32 to vector<8x256xf32>
    %189 = arith.select %187, %183, %188 : vector<8x256xi1>, vector<8x256xf32>
    %c1_i32_94 = arith.constant 1 : i32
    %190 = tpu.dynamic_rotate %158 by %c1_i32_94 dim 1 : vector<8x256xf32>, i32 -> vector<8x256xf32>
    %c1_i32_95 = arith.constant 1 : i32
    %191 = vector.broadcast %c1_i32_95 : i32 to vector<1x256xi32>
    %192 = arith.cmpi sge, %36, %191 : vector<1x256xi32>
    %cst_96 = arith.constant 0.000000e+00 : f32
    %193 = vector.shape_cast %192 : vector<1x256xi1> to vector<1x256xi1>
    %194 = vector.broadcast %193 : vector<1x256xi1> to vector<8x256xi1>
    %195 = vector.broadcast %cst_96 : f32 to vector<8x256xf32>
    %196 = arith.select %194, %190, %195 : vector<8x256xi1>, vector<8x256xf32>
    %197 = tpu.concatenate %168, %175, %182, %189, %155, %156, %196, %157, %158 in 0 : vector<8x256xf32>, vector<8x256xf32>, vector<8x256xf32>, vector<8x256xf32>, vector<8x256xf32>, vector<8x256xf32>, vector<8x256xf32>, vector<8x256xf32>, vector<8x256xf32> -> vector<72x256xf32>
    %198 = arith.truncf %197 : vector<72x256xf32> to vector<72x256xbf16>
    %c15_i32_97 = arith.constant 15 : i32
    %199 = tpu.dynamic_rotate %157 by %c15_i32_97 dim 1 : vector<8x256xf32>, i32 -> vector<8x256xf32>
    %c1_i32_98 = arith.constant 1 : i32
    %200 = vector.broadcast %c1_i32_98 : i32 to vector<1x256xi32>
    %201 = arith.cmpi sge, %34, %200 : vector<1x256xi32>
    %c15_i32_99 = arith.constant 15 : i32
    %202 = vector.broadcast %c15_i32_99 : i32 to vector<1x256xi32>
    %203 = arith.cmpi slt, %36, %202 : vector<1x256xi32>
    %204 = arith.andi %201, %203 : vector<1x256xi1>
    %cst_100 = arith.constant 0.000000e+00 : f32
    %205 = vector.shape_cast %204 : vector<1x256xi1> to vector<1x256xi1>
    %206 = vector.broadcast %205 : vector<1x256xi1> to vector<8x256xi1>
    %207 = vector.broadcast %cst_100 : f32 to vector<8x256xf32>
    %208 = arith.select %206, %199, %207 : vector<8x256xi1>, vector<8x256xf32>
    %c255_i32_101 = arith.constant 255 : i32
    %209 = tpu.dynamic_rotate %155 by %c255_i32_101 dim 1 : vector<8x256xf32>, i32 -> vector<8x256xf32>
    %c15_i32_102 = arith.constant 15 : i32
    %210 = vector.broadcast %c15_i32_102 : i32 to vector<1x256xi32>
    %211 = arith.cmpi slt, %36, %210 : vector<1x256xi32>
    %cst_103 = arith.constant 0.000000e+00 : f32
    %212 = vector.shape_cast %211 : vector<1x256xi1> to vector<1x256xi1>
    %213 = vector.broadcast %212 : vector<1x256xi1> to vector<8x256xi1>
    %214 = vector.broadcast %cst_103 : f32 to vector<8x256xf32>
    %215 = arith.select %213, %209, %214 : vector<8x256xi1>, vector<8x256xf32>
    %c255_i32_104 = arith.constant 255 : i32
    %216 = tpu.dynamic_rotate %157 by %c255_i32_104 dim 1 : vector<8x256xf32>, i32 -> vector<8x256xf32>
    %c15_i32_105 = arith.constant 15 : i32
    %217 = vector.broadcast %c15_i32_105 : i32 to vector<1x256xi32>
    %218 = arith.cmpi slt, %36, %217 : vector<1x256xi32>
    %cst_106 = arith.constant 0.000000e+00 : f32
    %219 = vector.shape_cast %218 : vector<1x256xi1> to vector<1x256xi1>
    %220 = vector.broadcast %219 : vector<1x256xi1> to vector<8x256xi1>
    %221 = vector.broadcast %cst_106 : f32 to vector<8x256xf32>
    %222 = arith.select %220, %216, %221 : vector<8x256xi1>, vector<8x256xf32>
    %223 = tpu.concatenate %175, %182, %208, %155, %156, %215, %157, %158, %222 in 0 : vector<8x256xf32>, vector<8x256xf32>, vector<8x256xf32>, vector<8x256xf32>, vector<8x256xf32>, vector<8x256xf32>, vector<8x256xf32>, vector<8x256xf32>, vector<8x256xf32> -> vector<72x256xf32>
    %224 = arith.truncf %223 : vector<72x256xf32> to vector<72x256xbf16>
    %c241_i32_107 = arith.constant 241 : i32
    %225 = tpu.dynamic_rotate %156 by %c241_i32_107 dim 1 : vector<8x256xf32>, i32 -> vector<8x256xf32>
    %c15_i32_108 = arith.constant 15 : i32
    %226 = vector.broadcast %c15_i32_108 : i32 to vector<1x256xi32>
    %227 = arith.cmpi slt, %34, %226 : vector<1x256xi32>
    %c1_i32_109 = arith.constant 1 : i32
    %228 = vector.broadcast %c1_i32_109 : i32 to vector<1x256xi32>
    %229 = arith.cmpi sge, %36, %228 : vector<1x256xi32>
    %230 = arith.andi %227, %229 : vector<1x256xi1>
    %cst_110 = arith.constant 0.000000e+00 : f32
    %231 = vector.shape_cast %230 : vector<1x256xi1> to vector<1x256xi1>
    %232 = vector.broadcast %231 : vector<1x256xi1> to vector<8x256xi1>
    %233 = vector.broadcast %cst_110 : f32 to vector<8x256xf32>
    %234 = arith.select %232, %225, %233 : vector<8x256xi1>, vector<8x256xf32>
    %c240_i32_111 = arith.constant 240 : i32
    %235 = tpu.dynamic_rotate %155 by %c240_i32_111 dim 1 : vector<8x256xf32>, i32 -> vector<8x256xf32>
    %c15_i32_112 = arith.constant 15 : i32
    %236 = vector.broadcast %c15_i32_112 : i32 to vector<1x256xi32>
    %237 = arith.cmpi slt, %34, %236 : vector<1x256xi32>
    %cst_113 = arith.constant 0.000000e+00 : f32
    %238 = vector.shape_cast %237 : vector<1x256xi1> to vector<1x256xi1>
    %239 = vector.broadcast %238 : vector<1x256xi1> to vector<8x256xi1>
    %240 = vector.broadcast %cst_113 : f32 to vector<8x256xf32>
    %241 = arith.select %239, %235, %240 : vector<8x256xi1>, vector<8x256xf32>
    %c240_i32_114 = arith.constant 240 : i32
    %242 = tpu.dynamic_rotate %156 by %c240_i32_114 dim 1 : vector<8x256xf32>, i32 -> vector<8x256xf32>
    %c15_i32_115 = arith.constant 15 : i32
    %243 = vector.broadcast %c15_i32_115 : i32 to vector<1x256xi32>
    %244 = arith.cmpi slt, %34, %243 : vector<1x256xi32>
    %cst_116 = arith.constant 0.000000e+00 : f32
    %245 = vector.shape_cast %244 : vector<1x256xi1> to vector<1x256xi1>
    %246 = vector.broadcast %245 : vector<1x256xi1> to vector<8x256xi1>
    %247 = vector.broadcast %cst_116 : f32 to vector<8x256xf32>
    %248 = arith.select %246, %242, %247 : vector<8x256xi1>, vector<8x256xf32>
    %249 = tpu.concatenate %189, %155, %156, %196, %157, %158, %234, %241, %248 in 0 : vector<8x256xf32>, vector<8x256xf32>, vector<8x256xf32>, vector<8x256xf32>, vector<8x256xf32>, vector<8x256xf32>, vector<8x256xf32>, vector<8x256xf32>, vector<8x256xf32> -> vector<72x256xf32>
    %250 = arith.truncf %249 : vector<72x256xf32> to vector<72x256xbf16>
    %c239_i32_117 = arith.constant 239 : i32
    %251 = tpu.dynamic_rotate %155 by %c239_i32_117 dim 1 : vector<8x256xf32>, i32 -> vector<8x256xf32>
    %c15_i32_118 = arith.constant 15 : i32
    %252 = vector.broadcast %c15_i32_118 : i32 to vector<1x256xi32>
    %253 = arith.cmpi slt, %34, %252 : vector<1x256xi32>
    %c15_i32_119 = arith.constant 15 : i32
    %254 = vector.broadcast %c15_i32_119 : i32 to vector<1x256xi32>
    %255 = arith.cmpi slt, %36, %254 : vector<1x256xi32>
    %256 = arith.andi %253, %255 : vector<1x256xi1>
    %cst_120 = arith.constant 0.000000e+00 : f32
    %257 = vector.shape_cast %256 : vector<1x256xi1> to vector<1x256xi1>
    %258 = vector.broadcast %257 : vector<1x256xi1> to vector<8x256xi1>
    %259 = vector.broadcast %cst_120 : f32 to vector<8x256xf32>
    %260 = arith.select %258, %251, %259 : vector<8x256xi1>, vector<8x256xf32>
    %261 = tpu.concatenate %155, %156, %215, %157, %158, %222, %241, %248, %260 in 0 : vector<8x256xf32>, vector<8x256xf32>, vector<8x256xf32>, vector<8x256xf32>, vector<8x256xf32>, vector<8x256xf32>, vector<8x256xf32>, vector<8x256xf32>, vector<8x256xf32> -> vector<72x256xf32>
    %262 = arith.truncf %261 : vector<72x256xf32> to vector<72x256xbf16>
    %263 = tpu.concatenate %198, %224, %250, %262 in 1 : vector<72x256xbf16>, vector<72x256xbf16>, vector<72x256xbf16>, vector<72x256xbf16> -> vector<72x1024xbf16>
    %c0_121 = arith.constant 0 : index
    %c0_122 = arith.constant 0 : index
    %264 = vector.load %arg9[%c0_121, %c0_122] : memref<8x72xbf16, #tpu.memory_space<vmem>>, vector<8x72xbf16>
    %cst_123 = arith.constant dense<0.000000e+00> : vector<8x1024xf32>
    %265 = tpu.matmul %264, %263, %cst_123 {dimension_numbers = #tpu.dot_dimension_numbers<[1], [0], [0], [1], [0, 0, 1, 1], [], []>} : vector<8x72xbf16>, vector<72x1024xbf16>, vector<8x1024xf32> -> vector<8x1024xf32>
    %c0_124 = arith.constant 0 : index
    %c0_125 = arith.constant 0 : index
    %266 = vector.load %arg10[%c0_124, %c0_125] : memref<8x1xf32, #tpu.memory_space<vmem>>, vector<8x1xf32>
    %267 = vector.broadcast %266 : vector<8x1xf32> to vector<8x1024xf32>
    %268 = arith.mulf %265, %267 : vector<8x1024xf32>
    %c0_126 = arith.constant 0 : index
    %c0_127 = arith.constant 0 : index
    %269 = vector.load %arg11[%c0_126, %c0_127] : memref<8x1xf32, #tpu.memory_space<vmem>>, vector<8x1xf32>
    %270 = vector.broadcast %269 : vector<8x1xf32> to vector<8x1024xf32>
    %271 = arith.addf %268, %270 : vector<8x1024xf32>
    %cst_128 = arith.constant 0.000000e+00 : f32
    %272 = vector.broadcast %cst_128 : f32 to vector<8x1024xf32>
    %273 = arith.maximumf %271, %272 : vector<8x1024xf32>
    %274 = vector.extract_strided_slice %273 {offsets = [0, 0], sizes = [8, 256], strides = [1, 1]} : vector<8x1024xf32> to vector<8x256xf32>
    %c0_129 = arith.constant 0 : index
    %c0_130 = arith.constant 0 : index
    %c8 = arith.constant 8 : index
    %c0_131 = arith.constant 0 : index
    %275 = vector.load %arg12[%c0_129, %c0_130, %c8, %c0_131] : memref<1x4x16x256xf32, #tpu.memory_space<vmem>>, vector<1x1x8x256xf32>
    %276 = vector.shape_cast %275 : vector<1x1x8x256xf32> to vector<8x256xf32>
    %277 = vector.shape_cast %274 : vector<8x256xf32> to vector<1x1x8x256xf32>
    tpu.vector_store %arg12[%c0_129, %c0_130, %c8, %c0_131], %277 {strides = array<i32>} : memref<1x4x16x256xf32, #tpu.memory_space<vmem>>, vector<1x1x8x256xf32>,
    %278 = vector.extract_strided_slice %273 {offsets = [0, 256], sizes = [8, 256], strides = [1, 1]} : vector<8x1024xf32> to vector<8x256xf32>
    %c0_132 = arith.constant 0 : index
    %c1 = arith.constant 1 : index
    %c8_133 = arith.constant 8 : index
    %c0_134 = arith.constant 0 : index
    %279 = vector.load %arg12[%c0_132, %c1, %c8_133, %c0_134] : memref<1x4x16x256xf32, #tpu.memory_space<vmem>>, vector<1x1x8x256xf32>
    %280 = vector.shape_cast %279 : vector<1x1x8x256xf32> to vector<8x256xf32>
    %281 = vector.shape_cast %278 : vector<8x256xf32> to vector<1x1x8x256xf32>
    tpu.vector_store %arg12[%c0_132, %c1, %c8_133, %c0_134], %281 {strides = array<i32>} : memref<1x4x16x256xf32, #tpu.memory_space<vmem>>, vector<1x1x8x256xf32>,
    %282 = vector.extract_strided_slice %273 {offsets = [0, 512], sizes = [8, 256], strides = [1, 1]} : vector<8x1024xf32> to vector<8x256xf32>
    %c0_135 = arith.constant 0 : index
    %c2 = arith.constant 2 : index
    %c8_136 = arith.constant 8 : index
    %c0_137 = arith.constant 0 : index
    %283 = vector.load %arg12[%c0_135, %c2, %c8_136, %c0_137] : memref<1x4x16x256xf32, #tpu.memory_space<vmem>>, vector<1x1x8x256xf32>
    %284 = vector.shape_cast %283 : vector<1x1x8x256xf32> to vector<8x256xf32>
    %285 = vector.shape_cast %282 : vector<8x256xf32> to vector<1x1x8x256xf32>
    tpu.vector_store %arg12[%c0_135, %c2, %c8_136, %c0_137], %285 {strides = array<i32>} : memref<1x4x16x256xf32, #tpu.memory_space<vmem>>, vector<1x1x8x256xf32>,
    %286 = vector.extract_strided_slice %273 {offsets = [0, 768], sizes = [8, 256], strides = [1, 1]} : vector<8x1024xf32> to vector<8x256xf32>
    %c0_138 = arith.constant 0 : index
    %c3 = arith.constant 3 : index
    %c8_139 = arith.constant 8 : index
    %c0_140 = arith.constant 0 : index
    %287 = vector.load %arg12[%c0_138, %c3, %c8_139, %c0_140] : memref<1x4x16x256xf32, #tpu.memory_space<vmem>>, vector<1x1x8x256xf32>
    %288 = vector.shape_cast %287 : vector<1x1x8x256xf32> to vector<8x256xf32>
    %289 = vector.shape_cast %286 : vector<8x256xf32> to vector<1x1x8x256xf32>
    tpu.vector_store %arg12[%c0_138, %c3, %c8_139, %c0_140], %289 {strides = array<i32>} : memref<1x4x16x256xf32, #tpu.memory_space<vmem>>, vector<1x1x8x256xf32>,
    %c0_i32_141 = arith.constant 0 : i32
    %c0_i32_142 = arith.constant 0 : i32
    %c0_i32_143 = arith.constant 0 : i32
    %c0_i32_144 = arith.constant 0 : i32
    %c0_i32_145 = arith.constant 0 : i32
    %290 = tpu.memref_slice %arg2[%1, %c0_i32_144, %c0_i32_145] : memref<8x8x256xf32, #tpu.memory_space<any>> -> memref<1x8x256xf32, #tpu.memory_space<any>>
    %291 = tpu.memref_squeeze %290 : memref<1x8x256xf32, #tpu.memory_space<any>> -> memref<8x256xf32, #tpu.memory_space<any>>
    %c0_i32_146 = arith.constant 0 : i32
    %c0_i32_147 = arith.constant 0 : i32
    %292 = tpu.memref_slice %arg12[%c0_i32_141, %c0_i32_142, %c0_i32_146, %c0_i32_147] : memref<1x4x16x256xf32, #tpu.memory_space<vmem>> -> memref<1x1x8x256xf32, #tpu.memory_space<vmem>>
    %293 = tpu.memref_squeeze %292 : memref<1x1x8x256xf32, #tpu.memory_space<vmem>> -> memref<8x256xf32, #tpu.memory_space<vmem>>
    %294 = tpu.memref_slice %arg13[%c0_i32_143] : memref<4x!tpu.dma_semaphore, #tpu.memory_space<semaphore_mem>> -> memref<1x!tpu.dma_semaphore, #tpu.memory_space<semaphore_mem>>
    %295 = tpu.memref_squeeze %294 : memref<1x!tpu.dma_semaphore, #tpu.memory_space<semaphore_mem>> -> memref<!tpu.dma_semaphore, #tpu.memory_space<semaphore_mem>>
    tpu.wait_dma2 semaphore(%295 : memref<!tpu.dma_semaphore, #tpu.memory_space<semaphore_mem>>) src(%291 : memref<8x256xf32, #tpu.memory_space<any>>) dst(%293 : memref<8x256xf32, #tpu.memory_space<vmem>>)
    %c0_i32_148 = arith.constant 0 : i32
    %c1_i32_149 = arith.constant 1 : i32
    %c1_i32_150 = arith.constant 1 : i32
    %c0_i32_151 = arith.constant 0 : i32
    %c0_i32_152 = arith.constant 0 : i32
    %296 = tpu.memref_slice %arg2[%9, %c0_i32_151, %c0_i32_152] : memref<8x8x256xf32, #tpu.memory_space<any>> -> memref<1x8x256xf32, #tpu.memory_space<any>>
    %297 = tpu.memref_squeeze %296 : memref<1x8x256xf32, #tpu.memory_space<any>> -> memref<8x256xf32, #tpu.memory_space<any>>
    %c0_i32_153 = arith.constant 0 : i32
    %c0_i32_154 = arith.constant 0 : i32
    %298 = tpu.memref_slice %arg12[%c0_i32_148, %c1_i32_149, %c0_i32_153, %c0_i32_154] : memref<1x4x16x256xf32, #tpu.memory_space<vmem>> -> memref<1x1x8x256xf32, #tpu.memory_space<vmem>>
    %299 = tpu.memref_squeeze %298 : memref<1x1x8x256xf32, #tpu.memory_space<vmem>> -> memref<8x256xf32, #tpu.memory_space<vmem>>
    %300 = tpu.memref_slice %arg13[%c1_i32_150] : memref<4x!tpu.dma_semaphore, #tpu.memory_space<semaphore_mem>> -> memref<1x!tpu.dma_semaphore, #tpu.memory_space<semaphore_mem>>
    %301 = tpu.memref_squeeze %300 : memref<1x!tpu.dma_semaphore, #tpu.memory_space<semaphore_mem>> -> memref<!tpu.dma_semaphore, #tpu.memory_space<semaphore_mem>>
    tpu.wait_dma2 semaphore(%301 : memref<!tpu.dma_semaphore, #tpu.memory_space<semaphore_mem>>) src(%297 : memref<8x256xf32, #tpu.memory_space<any>>) dst(%299 : memref<8x256xf32, #tpu.memory_space<vmem>>)
    %c0_i32_155 = arith.constant 0 : i32
    %c2_i32_156 = arith.constant 2 : i32
    %c2_i32_157 = arith.constant 2 : i32
    %c0_i32_158 = arith.constant 0 : i32
    %c0_i32_159 = arith.constant 0 : i32
    %302 = tpu.memref_slice %arg2[%17, %c0_i32_158, %c0_i32_159] : memref<8x8x256xf32, #tpu.memory_space<any>> -> memref<1x8x256xf32, #tpu.memory_space<any>>
    %303 = tpu.memref_squeeze %302 : memref<1x8x256xf32, #tpu.memory_space<any>> -> memref<8x256xf32, #tpu.memory_space<any>>
    %c0_i32_160 = arith.constant 0 : i32
    %c0_i32_161 = arith.constant 0 : i32
    %304 = tpu.memref_slice %arg12[%c0_i32_155, %c2_i32_156, %c0_i32_160, %c0_i32_161] : memref<1x4x16x256xf32, #tpu.memory_space<vmem>> -> memref<1x1x8x256xf32, #tpu.memory_space<vmem>>
    %305 = tpu.memref_squeeze %304 : memref<1x1x8x256xf32, #tpu.memory_space<vmem>> -> memref<8x256xf32, #tpu.memory_space<vmem>>
    %306 = tpu.memref_slice %arg13[%c2_i32_157] : memref<4x!tpu.dma_semaphore, #tpu.memory_space<semaphore_mem>> -> memref<1x!tpu.dma_semaphore, #tpu.memory_space<semaphore_mem>>
    %307 = tpu.memref_squeeze %306 : memref<1x!tpu.dma_semaphore, #tpu.memory_space<semaphore_mem>> -> memref<!tpu.dma_semaphore, #tpu.memory_space<semaphore_mem>>
    tpu.wait_dma2 semaphore(%307 : memref<!tpu.dma_semaphore, #tpu.memory_space<semaphore_mem>>) src(%303 : memref<8x256xf32, #tpu.memory_space<any>>) dst(%305 : memref<8x256xf32, #tpu.memory_space<vmem>>)
    %c0_i32_162 = arith.constant 0 : i32
    %c3_i32_163 = arith.constant 3 : i32
    %c3_i32_164 = arith.constant 3 : i32
    %c0_i32_165 = arith.constant 0 : i32
    %c0_i32_166 = arith.constant 0 : i32
    %308 = tpu.memref_slice %arg2[%25, %c0_i32_165, %c0_i32_166] : memref<8x8x256xf32, #tpu.memory_space<any>> -> memref<1x8x256xf32, #tpu.memory_space<any>>
    %309 = tpu.memref_squeeze %308 : memref<1x8x256xf32, #tpu.memory_space<any>> -> memref<8x256xf32, #tpu.memory_space<any>>
    %c0_i32_167 = arith.constant 0 : i32
    %c0_i32_168 = arith.constant 0 : i32
    %310 = tpu.memref_slice %arg12[%c0_i32_162, %c3_i32_163, %c0_i32_167, %c0_i32_168] : memref<1x4x16x256xf32, #tpu.memory_space<vmem>> -> memref<1x1x8x256xf32, #tpu.memory_space<vmem>>
    %311 = tpu.memref_squeeze %310 : memref<1x1x8x256xf32, #tpu.memory_space<vmem>> -> memref<8x256xf32, #tpu.memory_space<vmem>>
    %312 = tpu.memref_slice %arg13[%c3_i32_164] : memref<4x!tpu.dma_semaphore, #tpu.memory_space<semaphore_mem>> -> memref<1x!tpu.dma_semaphore, #tpu.memory_space<semaphore_mem>>
    %313 = tpu.memref_squeeze %312 : memref<1x!tpu.dma_semaphore, #tpu.memory_space<semaphore_mem>> -> memref<!tpu.dma_semaphore, #tpu.memory_space<semaphore_mem>>
    tpu.wait_dma2 semaphore(%313 : memref<!tpu.dma_semaphore, #tpu.memory_space<semaphore_mem>>) src(%309 : memref<8x256xf32, #tpu.memory_space<any>>) dst(%311 : memref<8x256xf32, #tpu.memory_space<vmem>>)
    return
  }
  func.func @transform_0(%arg0: i32) -> (i32, i32, i32) {
    %c0_i32 = arith.constant 0 : i32
    %c0_i32_0 = arith.constant 0 : i32
    %c0_i32_1 = arith.constant 0 : i32
    return %arg0, %c0_i32, %c0_i32_0 : i32, i32, i32
  }
  func.func @transform_2(%arg0: i32) -> (i32, i32) {
    %c0_i32 = arith.constant 0 : i32
    %c0_i32_0 = arith.constant 0 : i32
    %c0_i32_1 = arith.constant 0 : i32
    return %c0_i32, %c0_i32_0 : i32, i32
  }
  func.func @transform_3(%arg0: i32) -> (i32, i32) {
    %c0_i32 = arith.constant 0 : i32
    %c0_i32_0 = arith.constant 0 : i32
    %c0_i32_1 = arith.constant 0 : i32
    return %c0_i32, %c0_i32_0 : i32, i32
  }
  func.func @transform_4(%arg0: i32) -> (i32, i32) {
    %c0_i32 = arith.constant 0 : i32
    %c0_i32_0 = arith.constant 0 : i32
    %c0_i32_1 = arith.constant 0 : i32
    return %c0_i32, %c0_i32_0 : i32, i32
  }
  func.func @transform_5(%arg0: i32) -> (i32, i32) {
    %c0_i32 = arith.constant 0 : i32
    %c0_i32_0 = arith.constant 0 : i32
    %c0_i32_1 = arith.constant 0 : i32
    return %c0_i32, %c0_i32_0 : i32, i32
  }
  func.func @transform_6(%arg0: i32) -> (i32, i32) {
    %c0_i32 = arith.constant 0 : i32
    %c0_i32_0 = arith.constant 0 : i32
    %c0_i32_1 = arith.constant 0 : i32
    return %c0_i32, %c0_i32_0 : i32, i32
  }
  func.func @transform_7(%arg0: i32) -> (i32, i32) {
    %c0_i32 = arith.constant 0 : i32
    %c0_i32_0 = arith.constant 0 : i32
    %c0_i32_1 = arith.constant 0 : i32
    return %c0_i32, %c0_i32_0 : i32, i32
  }
  func.func @transform_8(%arg0: i32) -> (i32, i32) {
    %c0_i32 = arith.constant 0 : i32
    %c0_i32_0 = arith.constant 0 : i32
    %c0_i32_1 = arith.constant 0 : i32
    return %c0_i32, %c0_i32_0 : i32, i32
  }
  func.func @transform_9(%arg0: i32) -> (i32, i32) {
    %c0_i32 = arith.constant 0 : i32
    %c0_i32_0 = arith.constant 0 : i32
    %c0_i32_1 = arith.constant 0 : i32
    return %c0_i32, %c0_i32_0 : i32, i32
  }
  func.func @transform_10(%arg0: i32) -> (i32, i32) {
    %c0_i32 = arith.constant 0 : i32
    %c0_i32_0 = arith.constant 0 : i32
    %c0_i32_1 = arith.constant 0 : i32
    return %c0_i32, %c0_i32_0 : i32, i32
  }
  func.func @transform_11(%arg0: i32) -> (i32, i32, i32, i32) {
    %c0_i32 = arith.constant 0 : i32
    %c0_i32_0 = arith.constant 0 : i32
    %c0_i32_1 = arith.constant 0 : i32
    %c0_i32_2 = arith.constant 0 : i32
    return %arg0, %c0_i32, %c0_i32_0, %c0_i32_1 : i32, i32, i32, i32
  }
}

</mosaic_0001>

<llo_original>
// kernel: decoder_block_forward.1
$region0: #{decoder_block_forward.1}
  #allocation0 [shape = 'u32[]', space=smem, size = 0x4, offset = 0x4, fixed_abs, tag = 'smem constant byte address 0x4 - core index']
  #allocation1 [shape = 'u32[144,128]{1,0:T(1,128)}', space=vmem, size = 0x12000, scoped, tag = 'internal scratch']
  #allocation2 [shape = 's32[4]{0}', space=sflag, size = 0x10, scoped, tag = 'scratch operand']
  #allocation3 [shape = 's32[]', space=sflag, size = 0x4, offset = 0, fixed_abs, tag = 'sflag constant byte address 0x0 - dummy sync flag']
  #allocation4 [shape = 's32[]', space=sflag, size = 0x4, offset = 0, fixed_abs, tag = 'sflag constant byte address 0x0 - dummy sync flag']
  #allocation5 [shape = 's32[]', space=sflag, size = 0x4, offset = 0, fixed_abs, tag = 'sflag constant byte address 0x0 - dummy sync flag']
  #allocation6 [shape = 's32[]', space=sflag, size = 0x4, offset = 0, fixed_abs, tag = 'sflag constant byte address 0x0 - dummy sync flag']
  %s0 = inlined_call_operand.vmem [shape: f32[2,8,256], index: 0, kind: input, shape index: {}]
  %s1 = inlined_call_operand.vmem [shape: f32[8,8,256], index: 1, kind: input, shape index: {}]
  %s2 = inlined_call_operand.vmem [shape: bf16[8,72], index: 2, kind: input, shape index: {}]
  %s3 = inlined_call_operand.vmem [shape: f32[8,1], index: 3, kind: input, shape index: {}]
  %s4 = inlined_call_operand.vmem [shape: f32[8,1], index: 4, kind: input, shape index: {}]
  %s5 = inlined_call_operand.vmem [shape: bf16[32,32], index: 5, kind: input, shape index: {}]
  %s6 = inlined_call_operand.vmem [shape: f32[32,1], index: 6, kind: input, shape index: {}]
  %s7 = inlined_call_operand.vmem [shape: f32[32,1], index: 7, kind: input, shape index: {}]
  %s8 = inlined_call_operand.vmem [shape: bf16[8,72], index: 8, kind: input, shape index: {}]
  %s9 = inlined_call_operand.vmem [shape: f32[8,1], index: 9, kind: input, shape index: {}]
  %s10 = inlined_call_operand.vmem [shape: f32[8,1], index: 10, kind: input, shape index: {}]
  %s11 = inlined_call_operand.vmem [shape: f32[2,4,16,256], index: 11, kind: output, shape index: {}]
  %s12 = sld [smem:[#allocation0]]
  $region209: #{decoder_block_forward.1} parent=0
    _
  %s14 = ssub.s32 1, %s12
  %s15 = scalar_select 0, %s14, %s12
  loop: start=0, step=1, limit=4
  $region2: #{decoder_block_forward.1} parent=0 // loop_pre_header
    _
  $region3: #{decoder_block_forward.1} parent=0 // loop_header
    %s17 = sphi 0, %s21
    %p18 = scmp.ge.s32.totalorder %s17, 4
    %s27 = sphi 0, %s29
    %s30 = sphi 0, %s27
    %s31 = sphi 0, %s30
    %s47 = sphi 0, %s31
    %s51 = sphi 0, %s51
    %s53 = sphi 0, %s51
    %s54 = sphi 0, %s53
    %s68 = sphi 0, %s54
    %s72 = sphi 0, %s72
    %s74 = sphi 0, %s72
    %s75 = sphi 0, %s74
    %s89 = sphi 0, %s75
    %s93 = sphi 0, %s93
    %s95 = sphi 0, %s93
    %s96 = sphi 0, %s95
    %s110 = sphi 0, %s96
    %s114 = sphi 0, %s114
    %s116 = sphi 0, %s114
    %s117 = sphi 0, %s116
    %s131 = sphi 0, %s117
    %s135 = sphi 0, %s135
    %s137 = sphi 0, %s135
    %s138 = sphi 0, %s137
    %s152 = sphi 0, %s138
    %s156 = sphi 0, %s156
    %s158 = sphi 0, %s156
    %s159 = sphi 0, %s158
    %s173 = sphi 0, %s159
    %s177 = sphi 0, %s177
    %s179 = sphi 0, %s177
    %s180 = sphi 0, %s179
    %s194 = sphi 0, %s180
    %s198 = sphi 0, %s198
    %s200 = sphi 0, %s198
    %s201 = sphi 0, %s200
    %s215 = sphi 0, %s201
    %s219 = sphi 0, %s219
    %s221 = sphi 0, %s219
    %s222 = sphi 0, %s221
    %s236 = sphi 0, %s222
    %s242 = sphi 0, %s244
    %s245 = sphi 0, %s242
    %s246 = sphi 0, %s245
    %s262 = sphi 0, %s246
  $region4: #{decoder_block_forward.1} parent=0 // loop_header_branch
    %20 = sbr.rel (%p18) target = $region8
  $region5: #{decoder_block_forward.1} parent=0 // loop_body
    %s22 = ssub.s32 %s17, 1
    %s23 = ssub.s32 %s17, 2
    %s24 = sadd.s32 %s17, 1
    %s25 = ssub.s32 %s17, %s24
    %p26 = scmp.eq.s32.totalorder %s25, 0
    %s28 = sadd.s32 %s27, 1
    %s29 = scalar_select %p26, %s27, %s28
    %p32 = pneg %p26
    %p33 = scmp.eq.s32.totalorder %s17, 1
    %p34 = por %p32, %p33
    %p35 = scmp.ne.s32.totalorder %s27, %s30
    %p36 = scmp.eq.s32.totalorder %s17, 0
    %p37 = por %p35, %p36
    %p38 = scmp.ne.s32.totalorder %s27, %s30
    %p39 = scmp.eq.s32.totalorder %s22, 1
    %p40 = por %p38, %p39
    %p41 = scmp.ne.s32.totalorder %s30, %s31
    %p42 = scmp.eq.s32.totalorder %s22, 0
    %p43 = por %p41, %p42
    %p44 = scmp.ne.s32.totalorder %s30, %s31
    %p45 = scmp.eq.s32.totalorder %s23, 1
    %p46 = por %p44, %p45
    %p48 = scmp.ne.s32.totalorder %s31, %s47
    %p49 = scmp.eq.s32.totalorder %s23, 0
    %p50 = por %p48, %p49
    %s52 = sadd.s32 %s51, 1
    %p55 = scmp.eq.s32.totalorder %s17, 1
    %p56 = scmp.ne.s32.totalorder %s51, %s53
    %p57 = scmp.eq.s32.totalorder %s17, 0
    %p58 = por %p56, %p57
    %p59 = scmp.ne.s32.totalorder %s51, %s53
    %p60 = scmp.eq.s32.totalorder %s22, 1
    %p61 = por %p59, %p60
    %p62 = scmp.ne.s32.totalorder %s53, %s54
    %p63 = scmp.eq.s32.totalorder %s22, 0
    %p64 = por %p62, %p63
    %p65 = scmp.ne.s32.totalorder %s53, %s54
    %p66 = scmp.eq.s32.totalorder %s23, 1
    %p67 = por %p65, %p66
    %p69 = scmp.ne.s32.totalorder %s54, %s68
    %p70 = scmp.eq.s32.totalorder %s23, 0
    %p71 = por %p69, %p70
    %s73 = sadd.s32 %s72, 1
    %p76 = scmp.eq.s32.totalorder %s17, 1
    %p77 = scmp.ne.s32.totalorder %s72, %s74
    %p78 = scmp.eq.s32.totalorder %s17, 0
    %p79 = por %p77, %p78
    %p80 = scmp.ne.s32.totalorder %s72, %s74
    %p81 = scmp.eq.s32.totalorder %s22, 1
    %p82 = por %p80, %p81
    %p83 = scmp.ne.s32.totalorder %s74, %s75
    %p84 = scmp.eq.s32.totalorder %s22, 0
    %p85 = por %p83, %p84
    %p86 = scmp.ne.s32.totalorder %s74, %s75
    %p87 = scmp.eq.s32.totalorder %s23, 1
    %p88 = por %p86, %p87
    %p90 = scmp.ne.s32.totalorder %s75, %s89
    %p91 = scmp.eq.s32.totalorder %s23, 0
    %p92 = por %p90, %p91
    %s94 = sadd.s32 %s93, 1
    %p97 = scmp.eq.s32.totalorder %s17, 1
    %p98 = scmp.ne.s32.totalorder %s93, %s95
    %p99 = scmp.eq.s32.totalorder %s17, 0
    %p100 = por %p98, %p99
    %p101 = scmp.ne.s32.totalorder %s93, %s95
    %p102 = scmp.eq.s32.totalorder %s22, 1
    %p103 = por %p101, %p102
    %p104 = scmp.ne.s32.totalorder %s95, %s96
    %p105 = scmp.eq.s32.totalorder %s22, 0
    %p106 = por %p104, %p105
    %p107 = scmp.ne.s32.totalorder %s95, %s96
    %p108 = scmp.eq.s32.totalorder %s23, 1
    %p109 = por %p107, %p108
    %p111 = scmp.ne.s32.totalorder %s96, %s110
    %p112 = scmp.eq.s32.totalorder %s23, 0
    %p113 = por %p111, %p112
    %s115 = sadd.s32 %s114, 1
    %p118 = scmp.eq.s32.totalorder %s17, 1
    %p119 = scmp.ne.s32.totalorder %s114, %s116
    %p120 = scmp.eq.s32.totalorder %s17, 0
    %p121 = por %p119, %p120
    %p122 = scmp.ne.s32.totalorder %s114, %s116
    %p123 = scmp.eq.s32.totalorder %s22, 1
    %p124 = por %p122, %p123
    %p125 = scmp.ne.s32.totalorder %s116, %s117
    %p126 = scmp.eq.s32.totalorder %s22, 0
    %p127 = por %p125, %p126
    %p128 = scmp.ne.s32.totalorder %s116, %s117
    %p129 = scmp.eq.s32.totalorder %s23, 1
    %p130 = por %p128, %p129
    %p132 = scmp.ne.s32.totalorder %s117, %s131
    %p133 = scmp.eq.s32.totalorder %s23, 0
    %p134 = por %p132, %p133
    %s136 = sadd.s32 %s135, 1
    %p139 = scmp.eq.s32.totalorder %s17, 1
    %p140 = scmp.ne.s32.totalorder %s135, %s137
    %p141 = scmp.eq.s32.totalorder %s17, 0
    %p142 = por %p140, %p141
    %p143 = scmp.ne.s32.totalorder %s135, %s137
    %p144 = scmp.eq.s32.totalorder %s22, 1
    %p145 = por %p143, %p144
    %p146 = scmp.ne.s32.totalorder %s137, %s138
    %p147 = scmp.eq.s32.totalorder %s22, 0
    %p148 = por %p146, %p147
    %p149 = scmp.ne.s32.totalorder %s137, %s138
    %p150 = scmp.eq.s32.totalorder %s23, 1
    %p151 = por %p149, %p150
    %p153 = scmp.ne.s32.totalorder %s138, %s152
    %p154 = scmp.eq.s32.totalorder %s23, 0
    %p155 = por %p153, %p154
    %s157 = sadd.s32 %s156, 1
    %p160 = scmp.eq.s32.totalorder %s17, 1
    %p161 = scmp.ne.s32.totalorder %s156, %s158
    %p162 = scmp.eq.s32.totalorder %s17, 0
    %p163 = por %p161, %p162
    %p164 = scmp.ne.s32.totalorder %s156, %s158
    %p165 = scmp.eq.s32.totalorder %s22, 1
    %p166 = por %p164, %p165
    %p167 = scmp.ne.s32.totalorder %s158, %s159
    %p168 = scmp.eq.s32.totalorder %s22, 0
    %p169 = por %p167, %p168
    %p170 = scmp.ne.s32.totalorder %s158, %s159
    %p171 = scmp.eq.s32.totalorder %s23, 1
    %p172 = por %p170, %p171
    %p174 = scmp.ne.s32.totalorder %s159, %s173
    %p175 = scmp.eq.s32.totalorder %s23, 0
    %p176 = por %p174, %p175
    %s178 = sadd.s32 %s177, 1
    %p181 = scmp.eq.s32.totalorder %s17, 1
    %p182 = scmp.ne.s32.totalorder %s177, %s179
    %p183 = scmp.eq.s32.totalorder %s17, 0
    %p184 = por %p182, %p183
    %p185 = scmp.ne.s32.totalorder %s177, %s179
    %p186 = scmp.eq.s32.totalorder %s22, 1
    %p187 = por %p185, %p186
    %p188 = scmp.ne.s32.totalorder %s179, %s180
    %p189 = scmp.eq.s32.totalorder %s22, 0
    %p190 = por %p188, %p189
    %p191 = scmp.ne.s32.totalorder %s179, %s180
    %p192 = scmp.eq.s32.totalorder %s23, 1
    %p193 = por %p191, %p192
    %p195 = scmp.ne.s32.totalorder %s180, %s194
    %p196 = scmp.eq.s32.totalorder %s23, 0
    %p197 = por %p195, %p196
    %s199 = sadd.s32 %s198, 1
    %p202 = scmp.eq.s32.totalorder %s17, 1
    %p203 = scmp.ne.s32.totalorder %s198, %s200
    %p204 = scmp.eq.s32.totalorder %s17, 0
    %p205 = por %p203, %p204
    %p206 = scmp.ne.s32.totalorder %s198, %s200
    %p207 = scmp.eq.s32.totalorder %s22, 1
    %p208 = por %p206, %p207
    %p209 = scmp.ne.s32.totalorder %s200, %s201
    %p210 = scmp.eq.s32.totalorder %s22, 0
    %p211 = por %p209, %p210
    %p212 = scmp.ne.s32.totalorder %s200, %s201
    %p213 = scmp.eq.s32.totalorder %s23, 1
    %p214 = por %p212, %p213
    %p216 = scmp.ne.s32.totalorder %s201, %s215
    %p217 = scmp.eq.s32.totalorder %s23, 0
    %p218 = por %p216, %p217
    %s220 = sadd.s32 %s219, 1
    %p223 = scmp.eq.s32.totalorder %s17, 1
    %p224 = scmp.ne.s32.totalorder %s219, %s221
    %p225 = scmp.eq.s32.totalorder %s17, 0
    %p226 = por %p224, %p225
    %p227 = scmp.ne.s32.totalorder %s219, %s221
    %p228 = scmp.eq.s32.totalorder %s22, 1
    %p229 = por %p227, %p228
    %p230 = scmp.ne.s32.totalorder %s221, %s222
    %p231 = scmp.eq.s32.totalorder %s22, 0
    %p232 = por %p230, %p231
    %p233 = scmp.ne.s32.totalorder %s221, %s222
    %p234 = scmp.eq.s32.totalorder %s23, 1
    %p235 = por %p233, %p234
    %p237 = scmp.ne.s32.totalorder %s222, %s236
    %p238 = scmp.eq.s32.totalorder %s23, 0
    %p239 = por %p237, %p238
    %s240 = ssub.s32 %s17, %s24
    %p241 = scmp.eq.s32.totalorder %s240, 0
    %s243 = sadd.s32 %s242, 1
    %s244 = scalar_select %p241, %s242, %s243
    %p247 = pneg %p241
    %p248 = scmp.eq.s32.totalorder %s17, 1
    %p249 = por %p247, %p248
    %p250 = scmp.ne.s32.totalorder %s242, %s245
    %p251 = scmp.eq.s32.totalorder %s17, 0
    %p252 = por %p250, %p251
    %p253 = scmp.ne.s32.totalorder %s242, %s245
    %p254 = scmp.eq.s32.totalorder %s22, 1
    %p255 = por %p253, %p254
    %p256 = scmp.ne.s32.totalorder %s245, %s246
    %p257 = scmp.eq.s32.totalorder %s22, 0
    %p258 = por %p256, %p257
    %p259 = scmp.ne.s32.totalorder %s245, %s246
    %p260 = scmp.eq.s32.totalorder %s23, 1
    %p261 = por %p259, %p260
    %p263 = scmp.ne.s32.totalorder %s246, %s262
    %p264 = scmp.eq.s32.totalorder %s23, 0
    %p265 = por %p263, %p264
    %p266 = scmp.le.s32.totalorder 1, %s17
    %p267 = scmp.lt.s32.totalorder %s17, 3
    %p268 = pnand %p266, %p267
    %p269 = pneg %p268
    // Predicated region
    $region9: #{decoder_block_forward.1} parent=5 // pred_check
      _
    $region10: #{decoder_block_forward.1} parent=5 // pred_check_branch
      %271 = sbr.rel (%p268) target = $region12
    $region11: #{decoder_block_forward.1} parent=5 // pred_region
      %s272 = ssub.s32 %s17, 1
      // Predicated region
      $region13: #{decoder_block_forward.1} parent=11 // pred_check
        %p273 = pneg %p64
      $region14: #{decoder_block_forward.1} parent=11 // pred_check_branch
        %275 = sbr.rel (%p273) target = $region16
      $region15: #{decoder_block_forward.1} parent=11 // pred_region
        _
      $region16: #{decoder_block_forward.1} parent=11 // pred_fallthru
        _
      // Predicated region
      $region17: #{decoder_block_forward.1} parent=11 // pred_check
        %p276 = pneg %p85
      $region18: #{decoder_block_forward.1} parent=11 // pred_check_branch
        %278 = sbr.rel (%p276) target = $region20
      $region19: #{decoder_block_forward.1} parent=11 // pred_region
        _
      $region20: #{decoder_block_forward.1} parent=11 // pred_fallthru
        _
      // Predicated region
      $region21: #{decoder_block_forward.1} parent=11 // pred_check
        %p279 = pneg %p106
      $region22: #{decoder_block_forward.1} parent=11 // pred_check_branch
        %281 = sbr.rel (%p279) target = $region24
      $region23: #{decoder_block_forward.1} parent=11 // pred_region
        _
      $region24: #{decoder_block_forward.1} parent=11 // pred_fallthru
        _
      // Predicated region
      $region25: #{decoder_block_forward.1} parent=11 // pred_check
        %p282 = pneg %p127
      $region26: #{decoder_block_forward.1} parent=11 // pred_check_branch
        %284 = sbr.rel (%p282) target = $region28
      $region27: #{decoder_block_forward.1} parent=11 // pred_region
        _
      $region28: #{decoder_block_forward.1} parent=11 // pred_fallthru
        _
      // Predicated region
      $region29: #{decoder_block_forward.1} parent=11 // pred_check
        %p285 = pneg %p148
      $region30: #{decoder_block_forward.1} parent=11 // pred_check_branch
        %287 = sbr.rel (%p285) target = $region32
      $region31: #{decoder_block_forward.1} parent=11 // pred_region
        _
      $region32: #{decoder_block_forward.1} parent=11 // pred_fallthru
        _
      // Predicated region
      $region33: #{decoder_block_forward.1} parent=11 // pred_check
        %p288 = pneg %p169
      $region34: #{decoder_block_forward.1} parent=11 // pred_check_branch
        %290 = sbr.rel (%p288) target = $region36
      $region35: #{decoder_block_forward.1} parent=11 // pred_region
        _
      $region36: #{decoder_block_forward.1} parent=11 // pred_fallthru
        _
      // Predicated region
      $region37: #{decoder_block_forward.1} parent=11 // pred_check
        %p291 = pneg %p190
      $region38: #{decoder_block_forward.1} parent=11 // pred_check_branch
        %293 = sbr.rel (%p291) target = $region40
      $region39: #{decoder_block_forward.1} parent=11 // pred_region
        _
      $region40: #{decoder_block_forward.1} parent=11 // pred_fallthru
        _
      // Predicated region
      $region41: #{decoder_block_forward.1} parent=11 // pred_check
        %p294 = pneg %p211
      $region42: #{decoder_block_forward.1} parent=11 // pred_check_branch
        %296 = sbr.rel (%p294) target = $region44
      $region43: #{decoder_block_forward.1} parent=11 // pred_region
        _
      $region44: #{decoder_block_forward.1} parent=11 // pred_fallthru
        _
      // Predicated region
      $region45: #{decoder_block_forward.1} parent=11 // pred_check
        %p297 = pneg %p232
      $region46: #{decoder_block_forward.1} parent=11 // pred_check_branch
        %299 = sbr.rel (%p297) target = $region48
      $region47: #{decoder_block_forward.1} parent=11 // pred_region
        _
      $region48: #{decoder_block_forward.1} parent=11 // pred_fallthru
        _
    $region12: #{decoder_block_forward.1} parent=5 // pred_fallthru
      _
    %p300 = scmp.lt.s32.totalorder %s17, 2
    // Predicated region
    $region49: #{decoder_block_forward.1} parent=5 // pred_check
      %p301 = pneg %p300
    $region50: #{decoder_block_forward.1} parent=5 // pred_check_branch
      %303 = sbr.rel (%p301) target = $region52
    $region51: #{decoder_block_forward.1} parent=5 // pred_region
      // Predicated region
      $region53: #{decoder_block_forward.1} parent=51 // pred_check
        %p304 = pneg %p37
      $region54: #{decoder_block_forward.1} parent=51 // pred_check_branch
        %306 = sbr.rel (%p304) target = $region56
      $region55: #{decoder_block_forward.1} parent=51 // pred_region
        %p307 = scmp.lt.s32.totalorder %s17, 1
        %s308 = scalar_select %p307, %s17, 1
        %s309 = smul.addr %s308, 2
        %s310 = smul.addr %s309, 8
        %s311 = scalar_lea.vmem %s0, %s310
      $region56: #{decoder_block_forward.1} parent=51 // pred_fallthru
        _
    $region52: #{decoder_block_forward.1} parent=5 // pred_fallthru
      _
    %p312 = scmp.le.s32.totalorder 1, %s17
    %p313 = scmp.lt.s32.totalorder %s17, 3
    %p314 = pnand %p312, %p313
    %p315 = pneg %p314
    // Predicated region
    $region57: #{decoder_block_forward.1} parent=5 // pred_check
      _
    $region58: #{decoder_block_forward.1} parent=5 // pred_check_branch
      %317 = sbr.rel (%p314) target = $region60
    $region59: #{decoder_block_forward.1} parent=5 // pred_region
      %s318 = ssub.s32 %s17, 1
      %p319 = scmp.lt.s32.totalorder %s22, 1
      %s320 = scalar_select %p319, %s22, 1
      %s321 = smul.addr %s320, 2
      %s322 = smul.addr %s321, 8
      %s323 = scalar_lea.vmem %s0, %s322
      %p324 = pneg %p43
      %p325 = pneg %p40
      %p326 = pneg %p64
      %p327 = pneg %p61
      %p328 = pneg %p85
      %p329 = pneg %p82
      %p330 = pneg %p106
      %p331 = pneg %p103
      %p332 = pneg %p127
      %p333 = pneg %p124
      %p334 = pneg %p148
      %p335 = pneg %p145
      %p336 = pneg %p169
      %p337 = pneg %p166
      %p338 = pneg %p190
      %p339 = pneg %p187
      %p340 = pneg %p211
      %p341 = pneg %p208
      %p342 = pneg %p232
      %p343 = pneg %p229
      %p344 = pneg %p258
      %p345 = pneg %p255
      %p346 = scmp.lt.s32.totalorder %s22, 1
      %s347 = scalar_select %p346, %s22, 1
      %s348 = smul.addr %s347, 16
      %s349 = smul.addr %s348, 8
      %s350 = scalar_lea.vmem %s11, %s349
      %p351 = scmp.lt.s32.totalorder %s22, 1
      %s352 = scalar_select %p351, %s22, 1
      %s353 = smul.addr %s352, 2
      %s354 = smul.addr %s353, 8
      %s355 = scalar_lea.vmem %s0, %s354
      %p356 = scmp.lt.s32.totalorder %s22, 1
      %s357 = scalar_select %p356, %s22, 1
      %s358 = smul.addr %s357, 16
      %s359 = smul.addr %s358, 8
      %s360 = scalar_lea.vmem %s11, %s359
      %s362 = smul.u32 %s22, 4
      %s363 = smul.u32 %s362, 2
      %s364 = smul.addr %s363, 8
      %s365 = scalar_lea.vmem %s1, %s364
      %p367 = scmp.lt.u32.totalorder 16, 8
      %p368 = pneg %p367
      // Predicated region
      $region61: #{decoder_block_forward.1} parent=59 // pred_check
        _
      $region62: #{decoder_block_forward.1} parent=59 // pred_check_branch
        %370 = sbr.rel (%p367) target = $region64
      $region63: #{decoder_block_forward.1} parent=59 // pred_region
        %s385 = sand.u32 16, 7
        %p386 = scmp.eq.s32.totalorder %s385, 0
        // Predicated region
        $region76: #{decoder_block_forward.1} parent=63 // pred_check
          %p387 = pneg %p386
        $region77: #{decoder_block_forward.1} parent=63 // pred_check_branch
          %389 = sbr.rel (%p387) target = $region79
        $region78: #{decoder_block_forward.1} parent=63 // pred_region
          loop: start=0, step=1, limit=1
          $region80: #{decoder_block_forward.1} parent=78 // loop_pre_header
            _
          $region81: #{decoder_block_forward.1} parent=78 // loop_header
            %s391 = sphi 0, %s395
            %p392 = scmp.ge.s32.totalorder %s391, 1
            %s396 = sphi %s365, %s365
            %s397 = sphi %s360, %s360
          $region82: #{decoder_block_forward.1} parent=78 // loop_header_branch
            %394 = sbr.rel (%p392) target = $region86
          $region83: #{decoder_block_forward.1} parent=78 // loop_body
            %v398 = vld [vmem:[%s396] sm:$0xff]
            %399 = vst [vmem:[%s397] sm:$0xff] %v398
            %v400 = vld [vmem:[%s396 + $0x8] sm:$0xff]
            %401 = vst [vmem:[%s397 + $0x8] sm:$0xff] %v400
          $region84: #{decoder_block_forward.1} parent=78 // loop_footer
            %s395 = sadd.s32 1, %s391
          $region85: #{decoder_block_forward.1} parent=78 // loop_footer_branch
            %390 = sbr.rel target = $region81
          $region86: #{decoder_block_forward.1} parent=78 // loop_exit
            _
        $region79: #{decoder_block_forward.1} parent=63 // pred_fallthru
          _
        %p402 = pneg %p386
        // Predicated region
        $region87: #{decoder_block_forward.1} parent=63 // pred_check
          _
        $region88: #{decoder_block_forward.1} parent=63 // pred_check_branch
          %404 = sbr.rel (%p386) target = $region90
        $region89: #{decoder_block_forward.1} parent=63 // pred_region
          %s405 = sand.u32 16, 7
        $region90: #{decoder_block_forward.1} parent=63 // pred_fallthru
          _
      $region64: #{decoder_block_forward.1} parent=59 // pred_fallthru
        _
      // Predicated region
      $region65: #{decoder_block_forward.1} parent=59 // pred_check
        %p371 = pneg %p367
      $region66: #{decoder_block_forward.1} parent=59 // pred_check_branch
        %373 = sbr.rel (%p371) target = $region68
      $region67: #{decoder_block_forward.1} parent=59 // pred_region
        %s374 = sshllo.u32 0, 16
        loop: start=0, step=1, limit=1
        $region69: #{decoder_block_forward.1} parent=67 // loop_pre_header
          _
        $region70: #{decoder_block_forward.1} parent=67 // loop_header
          %s376 = sphi 0, %s380
          %p377 = scmp.ge.s32.totalorder %s376, 1
          %s381 = sphi %s365, %s365
          %s382 = sphi %s360, %s360
        $region71: #{decoder_block_forward.1} parent=67 // loop_header_branch
          %379 = sbr.rel (%p377) target = $region75
        $region72: #{decoder_block_forward.1} parent=67 // loop_body
          %v383 = vld [vmem:[%s381] sm:%s374]
          %384 = vst [vmem:[%s382] sm:%s374] %v383
        $region73: #{decoder_block_forward.1} parent=67 // loop_footer
          %s380 = sadd.s32 1, %s376
        $region74: #{decoder_block_forward.1} parent=67 // loop_footer_branch
          %375 = sbr.rel target = $region70
        $region75: #{decoder_block_forward.1} parent=67 // loop_exit
          _
      $region68: #{decoder_block_forward.1} parent=59 // pred_fallthru
        _
      // Predicated region
      $region91: #{decoder_block_forward.1} parent=59 // pred_check
        _
      $region92: #{decoder_block_forward.1} parent=59 // pred_check_branch
        %408 = sbr.rel (0) target = $region94
      $region93: #{decoder_block_forward.1} parent=59 // pred_region
        %409 = vsyncadd [#allocation2], 256
      $region94: #{decoder_block_forward.1} parent=59 // pred_fallthru
        _
      %s410 = sadd.s32 %s362, 1
      %s411 = smul.u32 %s410, 2
      %s412 = smul.addr %s411, 8
      %s413 = scalar_lea.vmem %s1, %s412
      %s414 = scalar_lea.vmem %s360, 32
      %s415 = scalar_lea.sflag [#allocation2], 1
      %p417 = scmp.lt.u32.totalorder 16, 8
      %p418 = pneg %p417
      // Predicated region
      $region95: #{decoder_block_forward.1} parent=59 // pred_check
        _
      $region96: #{decoder_block_forward.1} parent=59 // pred_check_branch
        %420 = sbr.rel (%p417) target = $region98
      $region97: #{decoder_block_forward.1} parent=59 // pred_region
        %s435 = sand.u32 16, 7
        %p436 = scmp.eq.s32.totalorder %s435, 0
        // Predicated region
        $region110: #{decoder_block_forward.1} parent=97 // pred_check
          %p437 = pneg %p436
        $region111: #{decoder_block_forward.1} parent=97 // pred_check_branch
          %439 = sbr.rel (%p437) target = $region113
        $region112: #{decoder_block_forward.1} parent=97 // pred_region
          loop: start=0, step=1, limit=1
          $region114: #{decoder_block_forward.1} parent=112 // loop_pre_header
            _
          $region115: #{decoder_block_forward.1} parent=112 // loop_header
            %s441 = sphi 0, %s445
            %p442 = scmp.ge.s32.totalorder %s441, 1
            %s446 = sphi %s413, %s413
            %s447 = sphi %s414, %s414
          $region116: #{decoder_block_forward.1} parent=112 // loop_header_branch
            %444 = sbr.rel (%p442) target = $region120
          $region117: #{decoder_block_forward.1} parent=112 // loop_body
            %v448 = vld [vmem:[%s446] sm:$0xff]
            %449 = vst [vmem:[%s447] sm:$0xff] %v448
            %v450 = vld [vmem:[%s446 + $0x8] sm:$0xff]
            %451 = vst [vmem:[%s447 + $0x8] sm:$0xff] %v450
          $region118: #{decoder_block_forward.1} parent=112 // loop_footer
            %s445 = sadd.s32 1, %s441
          $region119: #{decoder_block_forward.1} parent=112 // loop_footer_branch
            %440 = sbr.rel target = $region115
          $region120: #{decoder_block_forward.1} parent=112 // loop_exit
            _
        $region113: #{decoder_block_forward.1} parent=97 // pred_fallthru
          _
        %p452 = pneg %p436
        // Predicated region
        $region121: #{decoder_block_forward.1} parent=97 // pred_check
          _
        $region122: #{decoder_block_forward.1} parent=97 // pred_check_branch
          %454 = sbr.rel (%p436) target = $region124
        $region123: #{decoder_block_forward.1} parent=97 // pred_region
          %s455 = sand.u32 16, 7
        $region124: #{decoder_block_forward.1} parent=97 // pred_fallthru
          _
      $region98: #{decoder_block_forward.1} parent=59 // pred_fallthru
        _
      // Predicated region
      $region99: #{decoder_block_forward.1} parent=59 // pred_check
        %p421 = pneg %p417
      $region100: #{decoder_block_forward.1} parent=59 // pred_check_branch
        %423 = sbr.rel (%p421) target = $region102
      $region101: #{decoder_block_forward.1} parent=59 // pred_region
        %s424 = sshllo.u32 0, 16
        loop: start=0, step=1, limit=1
        $region103: #{decoder_block_forward.1} parent=101 // loop_pre_header
          _
        $region104: #{decoder_block_forward.1} parent=101 // loop_header
          %s426 = sphi 0, %s430
          %p427 = scmp.ge.s32.totalorder %s426, 1
          %s431 = sphi %s413, %s413
          %s432 = sphi %s414, %s414
        $region105: #{decoder_block_forward.1} parent=101 // loop_header_branch
          %429 = sbr.rel (%p427) target = $region109
        $region106: #{decoder_block_forward.1} parent=101 // loop_body
          %v433 = vld [vmem:[%s431] sm:%s424]
          %434 = vst [vmem:[%s432] sm:%s424] %v433
        $region107: #{decoder_block_forward.1} parent=101 // loop_footer
          %s430 = sadd.s32 1, %s426
        $region108: #{decoder_block_forward.1} parent=101 // loop_footer_branch
          %425 = sbr.rel target = $region104
        $region109: #{decoder_block_forward.1} parent=101 // loop_exit
          _
      $region102: #{decoder_block_forward.1} parent=59 // pred_fallthru
        _
      // Predicated region
      $region125: #{decoder_block_forward.1} parent=59 // pred_check
        _
      $region126: #{decoder_block_forward.1} parent=59 // pred_check_branch
        %458 = sbr.rel (0) target = $region128
      $region127: #{decoder_block_forward.1} parent=59 // pred_region
        %459 = vsyncadd %s415, 256
      $region128: #{decoder_block_forward.1} parent=59 // pred_fallthru
        _
      %s460 = sadd.s32 %s362, 2
      %s461 = smul.u32 %s460, 2
      %s462 = smul.addr %s461, 8
      %s463 = scalar_lea.vmem %s1, %s462
      %s464 = scalar_lea.vmem %s360, 64
      %s465 = scalar_lea.sflag [#allocation2], 2
      %p467 = scmp.lt.u32.totalorder 16, 8
      %p468 = pneg %p467
      // Predicated region
      $region129: #{decoder_block_forward.1} parent=59 // pred_check
        _
      $region130: #{decoder_block_forward.1} parent=59 // pred_check_branch
        %470 = sbr.rel (%p467) target = $region132
      $region131: #{decoder_block_forward.1} parent=59 // pred_region
        %s485 = sand.u32 16, 7
        %p486 = scmp.eq.s32.totalorder %s485, 0
        // Predicated region
        $region144: #{decoder_block_forward.1} parent=131 // pred_check
          %p487 = pneg %p486
        $region145: #{decoder_block_forward.1} parent=131 // pred_check_branch
          %489 = sbr.rel (%p487) target = $region147
        $region146: #{decoder_block_forward.1} parent=131 // pred_region
          loop: start=0, step=1, limit=1
          $region148: #{decoder_block_forward.1} parent=146 // loop_pre_header
            _
          $region149: #{decoder_block_forward.1} parent=146 // loop_header
            %s491 = sphi 0, %s495
            %p492 = scmp.ge.s32.totalorder %s491, 1
            %s496 = sphi %s463, %s463
            %s497 = sphi %s464, %s464
          $region150: #{decoder_block_forward.1} parent=146 // loop_header_branch
            %494 = sbr.rel (%p492) target = $region154
          $region151: #{decoder_block_forward.1} parent=146 // loop_body
            %v498 = vld [vmem:[%s496] sm:$0xff]
            %499 = vst [vmem:[%s497] sm:$0xff] %v498
            %v500 = vld [vmem:[%s496 + $0x8] sm:$0xff]
            %501 = vst [vmem:[%s497 + $0x8] sm:$0xff] %v500
          $region152: #{decoder_block_forward.1} parent=146 // loop_footer
            %s495 = sadd.s32 1, %s491
          $region153: #{decoder_block_forward.1} parent=146 // loop_footer_branch
            %490 = sbr.rel target = $region149
          $region154: #{decoder_block_forward.1} parent=146 // loop_exit
            _
        $region147: #{decoder_block_forward.1} parent=131 // pred_fallthru
          _
        %p502 = pneg %p486
        // Predicated region
        $region155: #{decoder_block_forward.1} parent=131 // pred_check
          _
        $region156: #{decoder_block_forward.1} parent=131 // pred_check_branch
          %504 = sbr.rel (%p486) target = $region158
        $region157: #{decoder_block_forward.1} parent=131 // pred_region
          %s505 = sand.u32 16, 7
        $region158: #{decoder_block_forward.1} parent=131 // pred_fallthru
          _
      $region132: #{decoder_block_forward.1} parent=59 // pred_fallthru
        _
      // Predicated region
      $region133: #{decoder_block_forward.1} parent=59 // pred_check
        %p471 = pneg %p467
      $region134: #{decoder_block_forward.1} parent=59 // pred_check_branch
        %473 = sbr.rel (%p471) target = $region136
      $region135: #{decoder_block_forward.1} parent=59 // pred_region
        %s474 = sshllo.u32 0, 16
        loop: start=0, step=1, limit=1
        $region137: #{decoder_block_forward.1} parent=135 // loop_pre_header
          _
        $region138: #{decoder_block_forward.1} parent=135 // loop_header
          %s476 = sphi 0, %s480
          %p477 = scmp.ge.s32.totalorder %s476, 1
          %s481 = sphi %s463, %s463
          %s482 = sphi %s464, %s464
        $region139: #{decoder_block_forward.1} parent=135 // loop_header_branch
          %479 = sbr.rel (%p477) target = $region143
        $region140: #{decoder_block_forward.1} parent=135 // loop_body
          %v483 = vld [vmem:[%s481] sm:%s474]
          %484 = vst [vmem:[%s482] sm:%s474] %v483
        $region141: #{decoder_block_forward.1} parent=135 // loop_footer
          %s480 = sadd.s32 1, %s476
        $region142: #{decoder_block_forward.1} parent=135 // loop_footer_branch
          %475 = sbr.rel target = $region138
        $region143: #{decoder_block_forward.1} parent=135 // loop_exit
          _
      $region136: #{decoder_block_forward.1} parent=59 // pred_fallthru
        _
      // Predicated region
      $region159: #{decoder_block_forward.1} parent=59 // pred_check
        _
      $region160: #{decoder_block_forward.1} parent=59 // pred_check_branch
        %508 = sbr.rel (0) target = $region162
      $region161: #{decoder_block_forward.1} parent=59 // pred_region
        %509 = vsyncadd %s465, 256
      $region162: #{decoder_block_forward.1} parent=59 // pred_fallthru
        _
      %s510 = sadd.s32 %s362, 3
      %s511 = smul.u32 %s510, 2
      %s512 = smul.addr %s511, 8
      %s513 = scalar_lea.vmem %s1, %s512
      %s514 = scalar_lea.vmem %s360, 96
      %s515 = scalar_lea.sflag [#allocation2], 3
      %p517 = scmp.lt.u32.totalorder 16, 8
      %p518 = pneg %p517
      // Predicated region
      $region163: #{decoder_block_forward.1} parent=59 // pred_check
        _
      $region164: #{decoder_block_forward.1} parent=59 // pred_check_branch
        %520 = sbr.rel (%p517) target = $region166
      $region165: #{decoder_block_forward.1} parent=59 // pred_region
        %s535 = sand.u32 16, 7
        %p536 = scmp.eq.s32.totalorder %s535, 0
        // Predicated region
        $region178: #{decoder_block_forward.1} parent=165 // pred_check
          %p537 = pneg %p536
        $region179: #{decoder_block_forward.1} parent=165 // pred_check_branch
          %539 = sbr.rel (%p537) target = $region181
        $region180: #{decoder_block_forward.1} parent=165 // pred_region
          loop: start=0, step=1, limit=1
          $region182: #{decoder_block_forward.1} parent=180 // loop_pre_header
            _
          $region183: #{decoder_block_forward.1} parent=180 // loop_header
            %s541 = sphi 0, %s545
            %p542 = scmp.ge.s32.totalorder %s541, 1
            %s546 = sphi %s513, %s513
            %s547 = sphi %s514, %s514
          $region184: #{decoder_block_forward.1} parent=180 // loop_header_branch
            %544 = sbr.rel (%p542) target = $region188
          $region185: #{decoder_block_forward.1} parent=180 // loop_body
            %v548 = vld [vmem:[%s546] sm:$0xff]
            %549 = vst [vmem:[%s547] sm:$0xff] %v548
            %v550 = vld [vmem:[%s546 + $0x8] sm:$0xff]
            %551 = vst [vmem:[%s547 + $0x8] sm:$0xff] %v550
          $region186: #{decoder_block_forward.1} parent=180 // loop_footer
            %s545 = sadd.s32 1, %s541
          $region187: #{decoder_block_forward.1} parent=180 // loop_footer_branch
            %540 = sbr.rel target = $region183
          $region188: #{decoder_block_forward.1} parent=180 // loop_exit
            _
        $region181: #{decoder_block_forward.1} parent=165 // pred_fallthru
          _
        %p552 = pneg %p536
        // Predicated region
        $region189: #{decoder_block_forward.1} parent=165 // pred_check
          _
        $region190: #{decoder_block_forward.1} parent=165 // pred_check_branch
          %554 = sbr.rel (%p536) target = $region192
        $region191: #{decoder_block_forward.1} parent=165 // pred_region
          %s555 = sand.u32 16, 7
        $region192: #{decoder_block_forward.1} parent=165 // pred_fallthru
          _
      $region166: #{decoder_block_forward.1} parent=59 // pred_fallthru
        _
      // Predicated region
      $region167: #{decoder_block_forward.1} parent=59 // pred_check
        %p521 = pneg %p517
      $region168: #{decoder_block_forward.1} parent=59 // pred_check_branch
        %523 = sbr.rel (%p521) target = $region170
      $region169: #{decoder_block_forward.1} parent=59 // pred_region
        %s524 = sshllo.u32 0, 16
        loop: start=0, step=1, limit=1
        $region171: #{decoder_block_forward.1} parent=169 // loop_pre_header
          _
        $region172: #{decoder_block_forward.1} parent=169 // loop_header
          %s526 = sphi 0, %s530
          %p527 = scmp.ge.s32.totalorder %s526, 1
          %s531 = sphi %s513, %s513
          %s532 = sphi %s514, %s514
        $region173: #{decoder_block_forward.1} parent=169 // loop_header_branch
          %529 = sbr.rel (%p527) target = $region177
        $region174: #{decoder_block_forward.1} parent=169 // loop_body
          %v533 = vld [vmem:[%s531] sm:%s524]
          %534 = vst [vmem:[%s532] sm:%s524] %v533
        $region175: #{decoder_block_forward.1} parent=169 // loop_footer
          %s530 = sadd.s32 1, %s526
        $region176: #{decoder_block_forward.1} parent=169 // loop_footer_branch
          %525 = sbr.rel target = $region172
        $region177: #{decoder_block_forward.1} parent=169 // loop_exit
          _
      $region170: #{decoder_block_forward.1} parent=59 // pred_fallthru
        _
      // Predicated region
      $region193: #{decoder_block_forward.1} parent=59 // pred_check
        _
      $region194: #{decoder_block_forward.1} parent=59 // pred_check_branch
        %558 = sbr.rel (0) target = $region196
      $region195: #{decoder_block_forward.1} parent=59 // pred_region
        %559 = vsyncadd %s515, 256
      $region196: #{decoder_block_forward.1} parent=59 // pred_fallthru
        _
      %v560 = vlaneseq
      %v561 = vand.u32 %v560, 127
      %v562 = vadd.s32 %v561, 128
      %v563 = vshra.s32 %v561, 4
      %v564 = vshra.s32 %v562, 4
      %v565 = vand.u32 %v561, 15
      %v566 = vand.u32 %v562, 15
      %v567 = vld [vmem:[%s355] sm:$0xff]
      %v568 = vld [vmem:[%s355 + $0x8] sm:$0xff]
      %569 = vrot.lane.b32.xlu0 %v567, 17
      %v570 = vpop.permute.xlu0 %569
      %571 = vrot.lane.b32.xlu0 %v568, 17
      %v572 = vpop.permute.xlu0 %571
      %vm573 = vcmp.lt.s32.totalorder %v561, 17
      %v574 = vsel %vm573, %v570, %v572
      %v575 = vsel %vm573, %v572, %v570
      %vm576 = vcmp.ge.s32.totalorder %v563, 1
      %vm577 = vcmp.ge.s32.totalorder %v564, 1
      %vm578 = vcmp.ge.s32.totalorder %v565, 1
      %vm579 = vcmp.ge.s32.totalorder %v566, 1
      %vm580 = vmand %vm576, %vm578
      %vm581 = vmand %vm577, %vm579
      %v582 = vsel %vm580, 1, 0
      %v583 = vsel %vm581, 1, 0
      %vm584 = vcmp.eq.s32.totalorder %v582, 1
      %vm585 = vcmp.eq.s32.totalorder %v583, 1
      %v586 = vsel %vm584, %v575, 0.0
      %v587 = vsel %vm585, %v574, 0.0
      %588 = vrot.lane.b32.xlu0 %v567, 16
      %v589 = vpop.permute.xlu0 %588
      %590 = vrot.lane.b32.xlu0 %v568, 16
      %v591 = vpop.permute.xlu0 %590
      %vm592 = vcmp.lt.s32.totalorder %v561, 16
      %v593 = vsel %vm592, %v589, %v591
      %v594 = vsel %vm592, %v591, %v589
      %v595 = vsel %vm576, 1, 0
      %v596 = vsel %vm577, 1, 0
      %vm597 = vcmp.eq.s32.totalorder %v595, 1
      %vm598 = vcmp.eq.s32.totalorder %v596, 1
      %v599 = vsel %vm597, %v594, 0.0
      %v600 = vsel %vm598, %v593, 0.0
      %601 = vrot.lane.b32.xlu0 %v567, 15
      %v602 = vpop.permute.xlu0 %601
      %603 = vrot.lane.b32.xlu0 %v568, 15
      %v604 = vpop.permute.xlu0 %603
      %vm605 = vcmp.lt.s32.totalorder %v561, 15
      %v606 = vsel %vm605, %v602, %v604
      %v607 = vsel %vm605, %v604, %v602
      %vm608 = vcmp.lt.s32.totalorder %v565, 15
      %vm609 = vcmp.lt.s32.totalorder %v566, 15
      %vm610 = vmand %vm576, %vm608
      %vm611 = vmand %vm577, %vm609
      %v612 = vsel %vm610, 1, 0
      %v613 = vsel %vm611, 1, 0
      %vm614 = vcmp.eq.s32.totalorder %v612, 1
      %vm615 = vcmp.eq.s32.totalorder %v613, 1
      %v616 = vsel %vm614, %v607, 0.0
      %v617 = vsel %vm615, %v606, 0.0
      %618 = vrot.lane.b32.xlu0 %v567, 1
      %v619 = vpop.permute.xlu0 %618
      %620 = vrot.lane.b32.xlu0 %v568, 1
      %v621 = vpop.permute.xlu0 %620
      %vm622 = vcmp.lt.s32.totalorder %v561, 1
      %v623 = vsel %vm622, %v619, %v621
      %v624 = vsel %vm622, %v621, %v619
      %v625 = vsel %vm578, 1, 0
      %v626 = vsel %vm579, 1, 0
      %vm627 = vcmp.eq.s32.totalorder %v625, 1
      %vm628 = vcmp.eq.s32.totalorder %v626, 1
      %v629 = vsel %vm627, %v624, 0.0
      %v630 = vsel %vm628, %v623, 0.0
      %631 = vrot.lane.b32.xlu0 %v567, 127
      %v632 = vpop.permute.xlu0 %631
      %633 = vrot.lane.b32.xlu0 %v568, 127
      %v634 = vpop.permute.xlu0 %633
      %vm635 = vcmp.lt.s32.totalorder %v561, 127
      %v636 = vsel %vm635, %v632, %v634
      %v637 = vsel %vm635, %v634, %v632
      %v638 = vsel %vm608, 1, 0
      %v639 = vsel %vm609, 1, 0
      %vm640 = vcmp.eq.s32.totalorder %v638, 1
      %vm641 = vcmp.eq.s32.totalorder %v639, 1
      %v642 = vsel %vm640, %v636, 0.0
      %v643 = vsel %vm641, %v637, 0.0
      %644 = vrot.lane.b32.xlu0 %v567, 113
      %v645 = vpop.permute.xlu0 %644
      %646 = vrot.lane.b32.xlu0 %v568, 113
      %v647 = vpop.permute.xlu0 %646
      %vm648 = vcmp.lt.s32.totalorder %v561, 113
      %v649 = vsel %vm648, %v645, %v647
      %v650 = vsel %vm648, %v647, %v645
      %vm651 = vcmp.lt.s32.totalorder %v563, 15
      %vm652 = vcmp.lt.s32.totalorder %v564, 15
      %vm653 = vmand %vm651, %vm578
      %vm654 = vmand %vm652, %vm579
      %v655 = vsel %vm653, 1, 0
      %v656 = vsel %vm654, 1, 0
      %vm657 = vcmp.eq.s32.totalorder %v655, 1
      %vm658 = vcmp.eq.s32.totalorder %v656, 1
      %v659 = vsel %vm657, %v649, 0.0
      %v660 = vsel %vm658, %v650, 0.0
      %661 = vrot.lane.b32.xlu0 %v567, 112
      %v662 = vpop.permute.xlu0 %661
      %663 = vrot.lane.b32.xlu0 %v568, 112
      %v664 = vpop.permute.xlu0 %663
      %vm665 = vcmp.lt.s32.totalorder %v561, 112
      %v666 = vsel %vm665, %v662, %v664
      %v667 = vsel %vm665, %v664, %v662
      %v668 = vsel %vm651, 1, 0
      %v669 = vsel %vm652, 1, 0
      %vm670 = vcmp.eq.s32.totalorder %v668, 1
      %vm671 = vcmp.eq.s32.totalorder %v669, 1
      %v672 = vsel %vm670, %v666, 0.0
      %v673 = vsel %vm671, %v667, 0.0
      %674 = vrot.lane.b32.xlu0 %v567, 111
      %v675 = vpop.permute.xlu0 %674
      %676 = vrot.lane.b32.xlu0 %v568, 111
      %v677 = vpop.permute.xlu0 %676
      %vm678 = vcmp.lt.s32.totalorder %v561, 111
      %v679 = vsel %vm678, %v675, %v677
      %v680 = vsel %vm678, %v677, %v675
      %vm681 = vmand %vm651, %vm608
      %vm682 = vmand %vm652, %vm609
      %v683 = vsel %vm681, 1, 0
      %v684 = vsel %vm682, 1, 0
      %vm685 = vcmp.eq.s32.totalorder %v683, 1
      %vm686 = vcmp.eq.s32.totalorder %v684, 1
      %v687 = vsel %vm685, %v679, 0.0
      %v688 = vsel %vm686, %v680, 0.0
      %v689 = vpack.c.bf16 %v599, %v586
      %v690 = vpack.c.bf16 %v600, %v587
      %v691 = vpack.c.bf16 %v629, %v616
      %v692 = vpack.c.bf16 %v630, %v617
      %v693 = vpack.c.bf16 %v642, %v567
      %v694 = vpack.c.bf16 %v643, %v568
      %v695 = vpack.c.bf16 %v672, %v659
      %v696 = vpack.c.bf16 %v673, %v660
      %v697 = vpack.c.bf16 %v687, %v687
      %v698 = vpack.c.bf16 %v688, %v688
      %v699 = vld [vmem:[%s2] sm:$0xf]
      %vm700 = vcmask 588800
      %v702 = vsel %vm700, %v699, 0
      %vm704 = vcmask 1043456
      %v706 = vsel %vm704, %v697, 0
      %v709 = vsel %vm704, %v698, 0
      %711 = vmatprep.subr.bf16.mxu0 %v690
      %712 = vmatpush1.bf16.msra.mxu0 %v689
      %713 = vmatprep.subr.bf16.mxu0 %v692
      %714 = vmatpush1.bf16.msra.mxu0 %v691
      %715 = vmatprep.subr.bf16.mxu0 %v694
      %716 = vmatpush1.bf16.msra.mxu0 %v693
      %717 = vmatprep.subr.bf16.mxu0 %v696
      %718 = vmatpush1.bf16.msra.mxu0 %v695
      %719 = vmatprep.subr.bf16.mxu0 %v709
      %720 = vmatpush1.bf16.msra.mxu0 %v706
      %721 = vmatprep.subr.bf16.mxu0 0
      %722 = vmatpush1.bf16.msra.mxu0 0
      %723 = vmatprep.subr.bf16.mxu0 0
      %724 = vmatpush1.bf16.msra.mxu0 0
      %725 = vmatprep.subr.bf16.mxu0 0
      %726 = vmatpush1.bf16.msra.mxu0 0
      %727 = vmatprep.subr.bf16.mxu0 0
      %728 = vmatpush1.bf16.msra.mxu0 0
      %729 = vmatprep.subr.bf16.mxu0 0
      %730 = vmatpush1.bf16.msra.mxu0 0
      %731 = vmatprep.subr.bf16.mxu0 0
      %732 = vmatpush1.bf16.msra.mxu0 0
      %733 = vmatprep.subr.bf16.mxu0 0
      %734 = vmatpush1.bf16.msra.mxu0 0
      %735 = vmatprep.subr.bf16.mxu0 0
      %736 = vmatpush1.bf16.msra.mxu0 0
      %737 = vmatprep.subr.bf16.mxu0 0
      %738 = vmatpush1.bf16.msra.mxu0 0
      %739 = vmatprep.subr.bf16.mxu0 0
      %740 = vmatpush1.bf16.msra.mxu0 0
      %741 = vmatprep.subr.bf16.mxu0 0
      %742 = vmatpush1.bf16.msra.mxu0 0
      %743 = vmatprep.mubr.bf16.mxu0 0
      %744 = vmatmul.mubr.bf16.gmra.mrb[0].mxu0 %v702
      %v745 = vpop.f32.mrb[0].mxu0
      %v746 = vadd.f32 0.0, %v745
      %v747 = vpop.f32.mrb[0].mxu0
      %v748 = vadd.f32 0.0, %v747
      %v749 = vpop.f32.mrb[0].mxu0
      %v750 = vpop.f32.mrb[0].mxu0
      %751 = vdwg.mxu0
      %v752 = vld [vmem:[%s3] sm:$0xff]
      %754 = vset.pattern.permute.xlu0 0
      %755 = vperm.xlu0 %754, %v752
      %v756 = vpop.permute.xlu0 %755
      %v758 = vmul.f32 %v746, %v756
      %v759 = vmul.f32 %v748, %v756
      %v760 = vld [vmem:[%s4] sm:$0xff]
      %762 = vset.pattern.permute.xlu0 0
      %763 = vperm.xlu0 %762, %v760
      %v764 = vpop.permute.xlu0 %763
      %v766 = vadd.f32 %v758, %v764
      %v767 = vadd.f32 %v759, %v764
      %v768 = vmax.f32 %v766, 0.0
      %v769 = vmax.f32 %v767, 0.0
      %770 = vrot.lane.b32.xlu0 %v768, 127
      %v771 = vpop.permute.xlu0 %770
      %772 = vrot.lane.b32.xlu0 %v769, 127
      %v773 = vpop.permute.xlu0 %772
      %v774 = vsel %vm635, %v771, %v773
      %v775 = vsel %vm635, %v773, %v771
      %v776 = vsel %vm640, %v774, 0.0
      %v777 = vsel %vm641, %v775, 0.0
      %778 = vrot.lane.b32.xlu0 %v768, 112
      %v779 = vpop.permute.xlu0 %778
      %780 = vrot.lane.b32.xlu0 %v769, 112
      %v781 = vpop.permute.xlu0 %780
      %v782 = vsel %vm665, %v779, %v781
      %v783 = vsel %vm665, %v781, %v779
      %v784 = vsel %vm670, %v782, 0.0
      %v785 = vsel %vm671, %v783, 0.0
      %786 = vrot.lane.b32.xlu0 %v768, 111
      %v787 = vpop.permute.xlu0 %786
      %788 = vrot.lane.b32.xlu0 %v769, 111
      %v789 = vpop.permute.xlu0 %788
      %v790 = vsel %vm678, %v787, %v789
      %v791 = vsel %vm678, %v789, %v787
      %v792 = vsel %vm685, %v790, 0.0
      %v793 = vsel %vm686, %v791, 0.0
      %v794 = vpack.c.bf16 %v776, %v768
      %v795 = vpack.c.bf16 %v777, %v769
      %v796 = vpack.c.bf16 %v792, %v784
      %v797 = vpack.c.bf16 %v793, %v785
      %v798 = vld [vmem:[%s5] sm:$0xf]
      %v799 = vld [vmem:[%s5 + $0x4] sm:$0xf]
      %v800 = vld [vmem:[%s5 + $0x8] sm:$0xf]
      %v801 = vld [vmem:[%s5 + $0xc] sm:$0xf]
      %v806 = vunpack.c.l.b16 %v798
      %v807 = vunpack.c.l.b16 %v799
      %v808 = vunpack.c.l.b16 %v800
      %v809 = vunpack.c.l.b16 %v801
      %v810 = vpack.c.b16 %v807, %v806
      %v811 = vpack.c.b16 %v809, %v808
      %vm812 = vcmask 261120
      %v814 = vsel %vm812, %v810, 0
      %v817 = vsel %vm812, %v811, 0
      %819 = vmatprep.subr.bf16.mxu0 %v795
      %820 = vmatpush1.bf16.msra.mxu0 %v794
      %821 = vmatprep.subr.bf16.mxu0 %v797
      %822 = vmatpush1.bf16.msra.mxu0 %v796
      %823 = vmatprep.subr.bf16.mxu0 0
      %824 = vmatpush1.bf16.msra.mxu0 0
      %825 = vmatprep.subr.bf16.mxu0 0
      %826 = vmatpush1.bf16.msra.mxu0 0
      %827 = vmatprep.subr.bf16.mxu0 0
      %828 = vmatpush1.bf16.msra.mxu0 0
      %829 = vmatprep.subr.bf16.mxu0 0
      %830 = vmatpush1.bf16.msra.mxu0 0
      %831 = vmatprep.subr.bf16.mxu0 0
      %832 = vmatpush1.bf16.msra.mxu0 0
      %833 = vmatprep.subr.bf16.mxu0 0
      %834 = vmatpush1.bf16.msra.mxu0 0
      %835 = vmatprep.subr.bf16.mxu0 0
      %836 = vmatpush1.bf16.msra.mxu0 0
      %837 = vmatprep.subr.bf16.mxu0 0
      %838 = vmatpush1.bf16.msra.mxu0 0
      %839 = vmatprep.subr.bf16.mxu0 0
      %840 = vmatpush1.bf16.msra.mxu0 0
      %841 = vmatprep.subr.bf16.mxu0 0
      %842 = vmatpush1.bf16.msra.mxu0 0
      %843 = vmatprep.subr.bf16.mxu0 0
      %844 = vmatpush1.bf16.msra.mxu0 0
      %845 = vmatprep.subr.bf16.mxu0 0
      %846 = vmatpush1.bf16.msra.mxu0 0
      %847 = vmatprep.subr.bf16.mxu0 0
      %848 = vmatpush1.bf16.msra.mxu0 0
      %849 = vmatprep.subr.bf16.mxu0 0
      %850 = vmatpush1.bf16.msra.mxu0 0
      %851 = vmatprep.mubr.bf16.mxu0 0
      %852 = vmatmul.mubr.bf16.gmra.mrb[0].mxu0 %v814
      %v853 = vpop.f32.mrb[0].mxu0
      %v854 = vadd.f32 0.0, %v853
      %v855 = vpop.f32.mrb[0].mxu0
      %v856 = vadd.f32 0.0, %v855
      %v857 = vpop.f32.mrb[0].mxu0
      %v858 = vadd.f32 0.0, %v857
      %v859 = vpop.f32.mrb[0].mxu0
      %v860 = vadd.f32 0.0, %v859
      %861 = vmatprep.mubr.bf16.mxu0 0
      %862 = vmatmul.mubr.bf16.gmra.mrb[0].mxu0 %v817
      %v863 = vpop.f32.mrb[0].mxu0
      %v864 = vadd.f32 0.0, %v863
      %v865 = vpop.f32.mrb[0].mxu0
      %v866 = vadd.f32 0.0, %v865
      %v867 = vpop.f32.mrb[0].mxu0
      %v868 = vadd.f32 0.0, %v867
      %v869 = vpop.f32.mrb[0].mxu0
      %v870 = vadd.f32 0.0, %v869
      %871 = vdwg.mxu0
      %v872 = vld [vmem:[%s6] sm:$0xff]
      %v873 = vld [vmem:[%s6 + $0x8] sm:$0xff]
      %v874 = vld [vmem:[%s6 + $0x10] sm:$0xff]
      %v875 = vld [vmem:[%s6 + $0x18] sm:$0xff]
      %877 = vset.pattern.permute.xlu0 0
      %878 = vperm.xlu0 %877, %v872
      %v879 = vpop.permute.xlu0 %878
      %882 = vset.pattern.permute.xlu0 0
      %883 = vperm.xlu0 %882, %v873
      %v884 = vpop.permute.xlu0 %883
      %887 = vset.pattern.permute.xlu0 0
      %888 = vperm.xlu0 %887, %v874
      %v889 = vpop.permute.xlu0 %888
      %892 = vset.pattern.permute.xlu0 0
      %893 = vperm.xlu0 %892, %v875
      %v894 = vpop.permute.xlu0 %893
      %v896 = vmul.f32 %v854, %v879
      %v897 = vmul.f32 %v856, %v879
      %v898 = vmul.f32 %v858, %v884
      %v899 = vmul.f32 %v860, %v884
      %v900 = vmul.f32 %v864, %v889
      %v901 = vmul.f32 %v866, %v889
      %v902 = vmul.f32 %v868, %v894
      %v903 = vmul.f32 %v870, %v894
      %v904 = vld [vmem:[%s7] sm:$0xff]
      %v905 = vld [vmem:[%s7 + $0x8] sm:$0xff]
      %v906 = vld [vmem:[%s7 + $0x10] sm:$0xff]
      %v907 = vld [vmem:[%s7 + $0x18] sm:$0xff]
      %909 = vset.pattern.permute.xlu0 0
      %910 = vperm.xlu0 %909, %v904
      %v911 = vpop.permute.xlu0 %910
      %914 = vset.pattern.permute.xlu0 0
      %915 = vperm.xlu0 %914, %v905
      %v916 = vpop.permute.xlu0 %915
      %919 = vset.pattern.permute.xlu0 0
      %920 = vperm.xlu0 %919, %v906
      %v921 = vpop.permute.xlu0 %920
      %924 = vset.pattern.permute.xlu0 0
      %925 = vperm.xlu0 %924, %v907
      %v926 = vpop.permute.xlu0 %925
      %v928 = vadd.f32 %v896, %v911
      %v929 = vadd.f32 %v897, %v911
      %v930 = vadd.f32 %v898, %v916
      %v931 = vadd.f32 %v899, %v916
      %v932 = vadd.f32 %v900, %v921
      %v933 = vadd.f32 %v901, %v921
      %v934 = vadd.f32 %v902, %v926
      %v935 = vadd.f32 %v903, %v926
      %v936 = vmax.f32 %v928, 0.0
      %v937 = vmax.f32 %v929, 0.0
      %v938 = vmax.f32 %v930, 0.0
      %v939 = vmax.f32 %v931, 0.0
      %v940 = vmax.f32 %v932, 0.0
      %v941 = vmax.f32 %v933, 0.0
      %v942 = vmax.f32 %v934, 0.0
      %v943 = vmax.f32 %v935, 0.0
      %944 = vrot.lane.b32.xlu0 %v942, 17
      %v945 = vpop.permute.xlu0 %944
      %946 = vrot.lane.b32.xlu0 %v943, 17
      %v947 = vpop.permute.xlu0 %946
      %v948 = vsel %vm573, %v945, %v947
      %v949 = vsel %vm573, %v947, %v945
      %v950 = vsel %vm584, %v949, 0.0
      %v951 = vsel %vm585, %v948, 0.0
      %952 = vrot.lane.b32.xlu0 %v940, 16
      %v953 = vpop.permute.xlu0 %952
      %954 = vrot.lane.b32.xlu0 %v941, 16
      %v955 = vpop.permute.xlu0 %954
      %v956 = vsel %vm592, %v953, %v955
      %v957 = vsel %vm592, %v955, %v953
      %v958 = vsel %vm597, %v957, 0.0
      %v959 = vsel %vm598, %v956, 0.0
      %960 = vrot.lane.b32.xlu0 %v942, 16
      %v961 = vpop.permute.xlu0 %960
      %962 = vrot.lane.b32.xlu0 %v943, 16
      %v963 = vpop.permute.xlu0 %962
      %v964 = vsel %vm592, %v961, %v963
      %v965 = vsel %vm592, %v963, %v961
      %v966 = vsel %vm597, %v965, 0.0
      %v967 = vsel %vm598, %v964, 0.0
      %968 = vrot.lane.b32.xlu0 %v938, 1
      %v969 = vpop.permute.xlu0 %968
      %970 = vrot.lane.b32.xlu0 %v939, 1
      %v971 = vpop.permute.xlu0 %970
      %v972 = vsel %vm622, %v969, %v971
      %v973 = vsel %vm622, %v971, %v969
      %v974 = vsel %vm627, %v973, 0.0
      %v975 = vsel %vm628, %v972, 0.0
      %976 = vrot.lane.b32.xlu0 %v942, 1
      %v977 = vpop.permute.xlu0 %976
      %978 = vrot.lane.b32.xlu0 %v943, 1
      %v979 = vpop.permute.xlu0 %978
      %v980 = vsel %vm622, %v977, %v979
      %v981 = vsel %vm622, %v979, %v977
      %v982 = vsel %vm627, %v981, 0.0
      %v983 = vsel %vm628, %v980, 0.0
      %v984 = vpack.c.bf16 %v958, %v950
      %v985 = vpack.c.bf16 %v959, %v951
      %v986 = vpack.c.bf16 %v974, %v966
      %v987 = vpack.c.bf16 %v975, %v967
      %v988 = vpack.c.bf16 %v938, %v936
      %v989 = vpack.c.bf16 %v939, %v937
      %v990 = vpack.c.bf16 %v940, %v982
      %v991 = vpack.c.bf16 %v941, %v983
      %v992 = vpack.c.bf16 %v942, %v942
      %v993 = vpack.c.bf16 %v943, %v943
      %994 = vrot.lane.b32.xlu0 %v940, 15
      %v995 = vpop.permute.xlu0 %994
      %996 = vrot.lane.b32.xlu0 %v941, 15
      %v997 = vpop.permute.xlu0 %996
      %v998 = vsel %vm605, %v995, %v997
      %v999 = vsel %vm605, %v997, %v995
      %v1000 = vsel %vm614, %v999, 0.0
      %v1001 = vsel %vm615, %v998, 0.0
      %1002 = vrot.lane.b32.xlu0 %v936, 127
      %v1003 = vpop.permute.xlu0 %1002
      %1004 = vrot.lane.b32.xlu0 %v937, 127
      %v1005 = vpop.permute.xlu0 %1004
      %v1006 = vsel %vm635, %v1003, %v1005
      %v1007 = vsel %vm635, %v1005, %v1003
      %v1008 = vsel %vm640, %v1006, 0.0
      %v1009 = vsel %vm641, %v1007, 0.0
      %1010 = vrot.lane.b32.xlu0 %v940, 127
      %v1011 = vpop.permute.xlu0 %1010
      %1012 = vrot.lane.b32.xlu0 %v941, 127
      %v1013 = vpop.permute.xlu0 %1012
      %v1014 = vsel %vm635, %v1011, %v1013
      %v1015 = vsel %vm635, %v1013, %v1011
      %v1016 = vsel %vm640, %v1014, 0.0
      %v1017 = vsel %vm641, %v1015, 0.0
      %v1018 = vpack.c.bf16 %v966, %v958
      %v1019 = vpack.c.bf16 %v967, %v959
      %v1020 = vpack.c.bf16 %v936, %v1000
      %v1021 = vpack.c.bf16 %v937, %v1001
      %v1022 = vpack.c.bf16 %v1008, %v938
      %v1023 = vpack.c.bf16 %v1009, %v939
      %v1024 = vpack.c.bf16 %v942, %v940
      %v1025 = vpack.c.bf16 %v943, %v941
      %v1026 = vpack.c.bf16 %v1016, %v1016
      %v1027 = vpack.c.bf16 %v1017, %v1017
      %1028 = vrot.lane.b32.xlu0 %v938, 113
      %v1029 = vpop.permute.xlu0 %1028
      %1030 = vrot.lane.b32.xlu0 %v939, 113
      %v1031 = vpop.permute.xlu0 %1030
      %v1032 = vsel %vm648, %v1029, %v1031
      %v1033 = vsel %vm648, %v1031, %v1029
      %v1034 = vsel %vm657, %v1032, 0.0
      %v1035 = vsel %vm658, %v1033, 0.0
      %1036 = vrot.lane.b32.xlu0 %v936, 112
      %v1037 = vpop.permute.xlu0 %1036
      %1038 = vrot.lane.b32.xlu0 %v937, 112
      %v1039 = vpop.permute.xlu0 %1038
      %v1040 = vsel %vm665, %v1037, %v1039
      %v1041 = vsel %vm665, %v1039, %v1037
      %v1042 = vsel %vm670, %v1040, 0.0
      %v1043 = vsel %vm671, %v1041, 0.0
      %1044 = vrot.lane.b32.xlu0 %v938, 112
      %v1045 = vpop.permute.xlu0 %1044
      %1046 = vrot.lane.b32.xlu0 %v939, 112
      %v1047 = vpop.permute.xlu0 %1046
      %v1048 = vsel %vm665, %v1045, %v1047
      %v1049 = vsel %vm665, %v1047, %v1045
      %v1050 = vsel %vm670, %v1048, 0.0
      %v1051 = vsel %vm671, %v1049, 0.0
      %v1052 = vpack.c.bf16 %v936, %v974
      %v1053 = vpack.c.bf16 %v937, %v975
      %v1054 = vpack.c.bf16 %v982, %v938
      %v1055 = vpack.c.bf16 %v983, %v939
      %v1056 = vpack.c.bf16 %v1042, %v1034
      %v1057 = vpack.c.bf16 %v1043, %v1035
      %v1058 = vpack.c.bf16 %v1050, %v1050
      %v1059 = vpack.c.bf16 %v1051, %v1051
      %1060 = vrot.lane.b32.xlu0 %v936, 111
      %v1061 = vpop.permute.xlu0 %1060
      %1062 = vrot.lane.b32.xlu0 %v937, 111
      %v1063 = vpop.permute.xlu0 %1062
      %v1064 = vsel %vm678, %v1061, %v1063
      %v1065 = vsel %vm678, %v1063, %v1061
      %v1066 = vsel %vm685, %v1064, 0.0
      %v1067 = vsel %vm686, %v1065, 0.0
      %v1068 = vpack.c.bf16 %v940, %v1008
      %v1069 = vpack.c.bf16 %v941, %v1009
      %v1070 = vpack.c.bf16 %v1016, %v942
      %v1071 = vpack.c.bf16 %v1017, %v943
      %v1072 = vpack.c.bf16 %v1050, %v1042
      %v1073 = vpack.c.bf16 %v1051, %v1043
      %v1074 = vpack.c.bf16 %v1066, %v1066
      %v1075 = vpack.c.bf16 %v1067, %v1067
      %v1076 = vld [vmem:[%s8] sm:$0xf]
      %v1078 = vsel %vm700, %v1076, 0
      %v1081 = vsel %vm704, %v992, 0
      %v1084 = vsel %vm704, %v993, 0
      %v1087 = vsel %vm704, %v1026, 0
      %v1090 = vsel %vm704, %v1027, 0
      %v1093 = vsel %vm704, %v1058, 0
      %v1096 = vsel %vm704, %v1059, 0
      %v1099 = vsel %vm704, %v1074, 0
      %v1102 = vsel %vm704, %v1075, 0
      %1104 = vmatprep.subr.bf16.mxu0 %v985
      %1105 = vmatpush1.bf16.msra.mxu0 %v984
      %1106 = vmatprep.subr.bf16.mxu0 %v987
      %1107 = vmatpush1.bf16.msra.mxu0 %v986
      %1108 = vmatprep.subr.bf16.mxu0 %v989
      %1109 = vmatpush1.bf16.msra.mxu0 %v988
      %1110 = vmatprep.subr.bf16.mxu0 %v991
      %1111 = vmatpush1.bf16.msra.mxu0 %v990
      %1112 = vmatprep.subr.bf16.mxu0 %v1084
      %1113 = vmatpush1.bf16.msra.mxu0 %v1081
      %1114 = vmatprep.subr.bf16.mxu0 0
      %1115 = vmatpush1.bf16.msra.mxu0 0
      %1116 = vmatprep.subr.bf16.mxu0 0
      %1117 = vmatpush1.bf16.msra.mxu0 0
      %1118 = vmatprep.subr.bf16.mxu0 0
      %1119 = vmatpush1.bf16.msra.mxu0 0
      %1120 = vmatprep.subr.bf16.mxu0 0
      %1121 = vmatpush1.bf16.msra.mxu0 0
      %1122 = vmatprep.subr.bf16.mxu0 0
      %1123 = vmatpush1.bf16.msra.mxu0 0
      %1124 = vmatprep.subr.bf16.mxu0 0
      %1125 = vmatpush1.bf16.msra.mxu0 0
      %1126 = vmatprep.subr.bf16.mxu0 0
      %1127 = vmatpush1.bf16.msra.mxu0 0
      %1128 = vmatprep.subr.bf16.mxu0 0
      %1129 = vmatpush1.bf16.msra.mxu0 0
      %1130 = vmatprep.subr.bf16.mxu0 0
      %1131 = vmatpush1.bf16.msra.mxu0 0
      %1132 = vmatprep.subr.bf16.mxu0 0
      %1133 = vmatpush1.bf16.msra.mxu0 0
      %1134 = vmatprep.subr.bf16.mxu0 0
      %1135 = vmatpush1.bf16.msra.mxu0 0
      %1136 = vmatprep.mubr.bf16.mxu0 0
      %1137 = vmatmul.mubr.bf16.gmra.mrb[0].mxu0 %v1078
      %v1138 = vpop.f32.mrb[0].mxu0
      %v1139 = vadd.f32 0.0, %v1138
      %v1140 = vpop.f32.mrb[0].mxu0
      %v1141 = vadd.f32 0.0, %v1140
      %v1142 = vpop.f32.mrb[0].mxu0
      %v1143 = vpop.f32.mrb[0].mxu0
      %1144 = vdwg.mxu0
      %1145 = vmatprep.subr.bf16.mxu0 %v1019
      %1146 = vmatpush1.bf16.msra.mxu0 %v1018
      %1147 = vmatprep.subr.bf16.mxu0 %v1021
      %1148 = vmatpush1.bf16.msra.mxu0 %v1020
      %1149 = vmatprep.subr.bf16.mxu0 %v1023
      %1150 = vmatpush1.bf16.msra.mxu0 %v1022
      %1151 = vmatprep.subr.bf16.mxu0 %v1025
      %1152 = vmatpush1.bf16.msra.mxu0 %v1024
      %1153 = vmatprep.subr.bf16.mxu0 %v1090
      %1154 = vmatpush1.bf16.msra.mxu0 %v1087
      %1155 = vmatprep.subr.bf16.mxu0 0
      %1156 = vmatpush1.bf16.msra.mxu0 0
      %1157 = vmatprep.subr.bf16.mxu0 0
      %1158 = vmatpush1.bf16.msra.mxu0 0
      %1159 = vmatprep.subr.bf16.mxu0 0
      %1160 = vmatpush1.bf16.msra.mxu0 0
      %1161 = vmatprep.subr.bf16.mxu0 0
      %1162 = vmatpush1.bf16.msra.mxu0 0
      %1163 = vmatprep.subr.bf16.mxu0 0
      %1164 = vmatpush1.bf16.msra.mxu0 0
      %1165 = vmatprep.subr.bf16.mxu0 0
      %1166 = vmatpush1.bf16.msra.mxu0 0
      %1167 = vmatprep.subr.bf16.mxu0 0
      %1168 = vmatpush1.bf16.msra.mxu0 0
      %1169 = vmatprep.subr.bf16.mxu0 0
      %1170 = vmatpush1.bf16.msra.mxu0 0
      %1171 = vmatprep.subr.bf16.mxu0 0
      %1172 = vmatpush1.bf16.msra.mxu0 0
      %1173 = vmatprep.subr.bf16.mxu0 0
      %1174 = vmatpush1.bf16.msra.mxu0 0
      %1175 = vmatprep.subr.bf16.mxu0 0
      %1176 = vmatpush1.bf16.msra.mxu0 0
      %1177 = vmatprep.mubr.bf16.mxu0 0
      %1178 = vmatmul.mubr.bf16.gmra.mrb[0].mxu0 %v1078
      %v1179 = vpop.f32.mrb[0].mxu0
      %v1180 = vadd.f32 0.0, %v1179
      %v1181 = vpop.f32.mrb[0].mxu0
      %v1182 = vadd.f32 0.0, %v1181
      %v1183 = vpop.f32.mrb[0].mxu0
      %v1184 = vpop.f32.mrb[0].mxu0
      %1185 = vdwg.mxu0
      %1186 = vmatprep.subr.bf16.mxu0 %v1053
      %1187 = vmatpush1.bf16.msra.mxu0 %v1052
      %1188 = vmatprep.subr.bf16.mxu0 %v1055
      %1189 = vmatpush1.bf16.msra.mxu0 %v1054
      %1190 = vmatprep.subr.bf16.mxu0 %v1025
      %1191 = vmatpush1.bf16.msra.mxu0 %v1024
      %1192 = vmatprep.subr.bf16.mxu0 %v1057
      %1193 = vmatpush1.bf16.msra.mxu0 %v1056
      %1194 = vmatprep.subr.bf16.mxu0 %v1096
      %1195 = vmatpush1.bf16.msra.mxu0 %v1093
      %1196 = vmatprep.subr.bf16.mxu0 0
      %1197 = vmatpush1.bf16.msra.mxu0 0
      %1198 = vmatprep.subr.bf16.mxu0 0
      %1199 = vmatpush1.bf16.msra.mxu0 0
      %1200 = vmatprep.subr.bf16.mxu0 0
      %1201 = vmatpush1.bf16.msra.mxu0 0
      %1202 = vmatprep.subr.bf16.mxu0 0
      %1203 = vmatpush1.bf16.msra.mxu0 0
      %1204 = vmatprep.subr.bf16.mxu0 0
      %1205 = vmatpush1.bf16.msra.mxu0 0
      %1206 = vmatprep.subr.bf16.mxu0 0
      %1207 = vmatpush1.bf16.msra.mxu0 0
      %1208 = vmatprep.subr.bf16.mxu0 0
      %1209 = vmatpush1.bf16.msra.mxu0 0
      %1210 = vmatprep.subr.bf16.mxu0 0
      %1211 = vmatpush1.bf16.msra.mxu0 0
      %1212 = vmatprep.subr.bf16.mxu0 0
      %1213 = vmatpush1.bf16.msra.mxu0 0
      %1214 = vmatprep.subr.bf16.mxu0 0
      %1215 = vmatpush1.bf16.msra.mxu0 0
      %1216 = vmatprep.subr.bf16.mxu0 0
      %1217 = vmatpush1.bf16.msra.mxu0 0
      %1218 = vmatprep.mubr.bf16.mxu0 0
      %1219 = vmatmul.mubr.bf16.gmra.mrb[0].mxu0 %v1078
      %v1220 = vpop.f32.mrb[0].mxu0
      %v1221 = vadd.f32 0.0, %v1220
      %v1222 = vpop.f32.mrb[0].mxu0
      %v1223 = vadd.f32 0.0, %v1222
      %v1224 = vpop.f32.mrb[0].mxu0
      %v1225 = vpop.f32.mrb[0].mxu0
      %1226 = vdwg.mxu0
      %1227 = vmatprep.subr.bf16.mxu0 %v989
      %1228 = vmatpush1.bf16.msra.mxu0 %v988
      %1229 = vmatprep.subr.bf16.mxu0 %v1069
      %1230 = vmatpush1.bf16.msra.mxu0 %v1068
      %1231 = vmatprep.subr.bf16.mxu0 %v1071
      %1232 = vmatpush1.bf16.msra.mxu0 %v1070
      %1233 = vmatprep.subr.bf16.mxu0 %v1073
      %1234 = vmatpush1.bf16.msra.mxu0 %v1072
      %1235 = vmatprep.subr.bf16.mxu0 %v1102
      %1236 = vmatpush1.bf16.msra.mxu0 %v1099
      %1237 = vmatprep.subr.bf16.mxu0 0
      %1238 = vmatpush1.bf16.msra.mxu0 0
      %1239 = vmatprep.subr.bf16.mxu0 0
      %1240 = vmatpush1.bf16.msra.mxu0 0
      %1241 = vmatprep.subr.bf16.mxu0 0
      %1242 = vmatpush1.bf16.msra.mxu0 0
      %1243 = vmatprep.subr.bf16.mxu0 0
      %1244 = vmatpush1.bf16.msra.mxu0 0
      %1245 = vmatprep.subr.bf16.mxu0 0
      %1246 = vmatpush1.bf16.msra.mxu0 0
      %1247 = vmatprep.subr.bf16.mxu0 0
      %1248 = vmatpush1.bf16.msra.mxu0 0
      %1249 = vmatprep.subr.bf16.mxu0 0
      %1250 = vmatpush1.bf16.msra.mxu0 0
      %1251 = vmatprep.subr.bf16.mxu0 0
      %1252 = vmatpush1.bf16.msra.mxu0 0
      %1253 = vmatprep.subr.bf16.mxu0 0
      %1254 = vmatpush1.bf16.msra.mxu0 0
      %1255 = vmatprep.subr.bf16.mxu0 0
      %1256 = vmatpush1.bf16.msra.mxu0 0
      %1257 = vmatprep.subr.bf16.mxu0 0
      %1258 = vmatpush1.bf16.msra.mxu0 0
      %1259 = vmatprep.mubr.bf16.mxu0 0
      %1260 = vmatmul.mubr.bf16.gmra.mrb[0].mxu0 %v1078
      %v1261 = vpop.f32.mrb[0].mxu0
      %v1262 = vadd.f32 0.0, %v1261
      %v1263 = vpop.f32.mrb[0].mxu0
      %v1264 = vadd.f32 0.0, %v1263
      %v1265 = vpop.f32.mrb[0].mxu0
      %v1266 = vpop.f32.mrb[0].mxu0
      %1267 = vdwg.mxu0
      %v1268 = vld [vmem:[%s9] sm:$0xff]
      %1270 = vset.pattern.permute.xlu0 0
      %1271 = vperm.xlu0 %1270, %v1268
      %v1272 = vpop.permute.xlu0 %1271
      %v1274 = vmul.f32 %v1139, %v1272
      %v1275 = vmul.f32 %v1141, %v1272
      %v1276 = vmul.f32 %v1180, %v1272
      %v1277 = vmul.f32 %v1182, %v1272
      %v1278 = vmul.f32 %v1221, %v1272
      %v1279 = vmul.f32 %v1223, %v1272
      %v1280 = vmul.f32 %v1262, %v1272
      %v1281 = vmul.f32 %v1264, %v1272
      %v1282 = vld [vmem:[%s10] sm:$0xff]
      %1284 = vset.pattern.permute.xlu0 0
      %1285 = vperm.xlu0 %1284, %v1282
      %v1286 = vpop.permute.xlu0 %1285
      %v1288 = vadd.f32 %v1274, %v1286
      %v1289 = vadd.f32 %v1275, %v1286
      %v1290 = vadd.f32 %v1276, %v1286
      %v1291 = vadd.f32 %v1277, %v1286
      %v1292 = vadd.f32 %v1278, %v1286
      %v1293 = vadd.f32 %v1279, %v1286
      %v1294 = vadd.f32 %v1280, %v1286
      %v1295 = vadd.f32 %v1281, %v1286
      %v1296 = vmax.f32 %v1288, 0.0
      %v1297 = vmax.f32 %v1289, 0.0
      %v1298 = vmax.f32 %v1290, 0.0
      %v1299 = vmax.f32 %v1291, 0.0
      %v1300 = vmax.f32 %v1292, 0.0
      %v1301 = vmax.f32 %v1293, 0.0
      %v1302 = vmax.f32 %v1294, 0.0
      %v1303 = vmax.f32 %v1295, 0.0
      %1304 = vst [vmem:[%s360 + $0x10] sm:$0xff] %v1296
      %1305 = vst [vmem:[%s360 + $0x18] sm:$0xff] %v1297
      %1306 = vst [vmem:[%s414 + $0x10] sm:$0xff] %v1298
      %1307 = vst [vmem:[%s414 + $0x18] sm:$0xff] %v1299
      %1308 = vst [vmem:[%s464 + $0x10] sm:$0xff] %v1300
      %1309 = vst [vmem:[%s464 + $0x18] sm:$0xff] %v1301
      %1310 = vst [vmem:[%s514 + $0x10] sm:$0xff] %v1302
      %1311 = vst [vmem:[%s514 + $0x18] sm:$0xff] %v1303
      %s1312 = smul.u32 8, 1
      %s1313 = smul.u32 %s1312, 2
      %s1314 = sshll.u32 %s1313, 4
      %1315 = dma.done [#allocation2], %s1314
      %s1316 = sshll.u32 %s1313, 4
      %1317 = dma.done %s415, %s1316
      %s1318 = sshll.u32 %s1313, 4
      %1319 = dma.done %s465, %s1318
      %s1320 = sshll.u32 %s1313, 4
      %1321 = dma.done %s515, %s1320
      %p1322 = scmp.lt.s32.totalorder %s22, 1
      %s1323 = scalar_select %p1322, %s22, 1
      %s1324 = smul.addr %s1323, 16
      %s1325 = smul.addr %s1324, 8
      %s1326 = scalar_lea.vmem %s11, %s1325
      // Predicated region
      $region197: #{decoder_block_forward.1} parent=59 // pred_check
        %p1327 = pneg %p255
      $region198: #{decoder_block_forward.1} parent=59 // pred_check_branch
        %1329 = sbr.rel (%p1327) target = $region200
      $region199: #{decoder_block_forward.1} parent=59 // pred_region
        _
      $region200: #{decoder_block_forward.1} parent=59 // pred_fallthru
        _
    $region60: #{decoder_block_forward.1} parent=5 // pred_fallthru
      _
    %p1330 = scmp.le.s32.totalorder 2, %s17
    // Predicated region
    $region201: #{decoder_block_forward.1} parent=5 // pred_check
      %p1331 = pneg %p1330
    $region202: #{decoder_block_forward.1} parent=5 // pred_check_branch
      %1333 = sbr.rel (%p1331) target = $region204
    $region203: #{decoder_block_forward.1} parent=5 // pred_region
      %s1334 = ssub.s32 %s17, 2
      // Predicated region
      $region205: #{decoder_block_forward.1} parent=203 // pred_check
        %p1335 = pneg %p261
      $region206: #{decoder_block_forward.1} parent=203 // pred_check_branch
        %1337 = sbr.rel (%p1335) target = $region208
      $region207: #{decoder_block_forward.1} parent=203 // pred_region
        %p1338 = scmp.lt.s32.totalorder %s23, 1
        %s1339 = scalar_select %p1338, %s23, 1
        %s1340 = smul.addr %s1339, 16
        %s1341 = smul.addr %s1340, 8
        %s1342 = scalar_lea.vmem %s11, %s1341
      $region208: #{decoder_block_forward.1} parent=203 // pred_fallthru
        _
    $region204: #{decoder_block_forward.1} parent=5 // pred_fallthru
      _
  $region6: #{decoder_block_forward.1} parent=0 // loop_footer
    %s21 = sadd.s32 1, %s17
  $region7: #{decoder_block_forward.1} parent=0 // loop_footer_branch
    %16 = sbr.rel target = $region3
  $region8: #{decoder_block_forward.1} parent=0 // loop_exit
    _
  %1343 = vsyncmov [#allocation2]
  %s1344 = vpop.sfrf %1343
  %p1345 = scmp.eq.s32.totalorder %s1344, 0
  %p1346 = pneg %p1345
  %1348 = shalt.err (%p1346)
  %s1349 = scalar_lea.sflag [#allocation2], 1
  %1350 = vsyncmov %s1349
  %s1351 = vpop.sfrf %1350
  %p1352 = scmp.eq.s32.totalorder %s1351, 0
  %p1353 = pneg %p1352
  %1355 = shalt.err (%p1353)
  %s1356 = scalar_lea.sflag [#allocation2], 2
  %1357 = vsyncmov %s1356
  %s1358 = vpop.sfrf %1357
  %p1359 = scmp.eq.s32.totalorder %s1358, 0
  %p1360 = pneg %p1359
  %1362 = shalt.err (%p1360)
  %s1363 = scalar_lea.sflag [#allocation2], 3
  %1364 = vsyncmov %s1363
  %s1365 = vpop.sfrf %1364
  %p1366 = scmp.eq.s32.totalorder %s1365, 0
  %p1367 = pneg %p1366
  %1369 = shalt.err (%p1367)

</llo_original>
